<compile_context>
chip_gen: v7x
topology: tpu7x:2x2x1
jax: 0.10.0
libtpu: 0.0.40
codegen_flags: <defaults>
</compile_context>

<pallas_src>
import jax
import jax.numpy as jnp
from jax import lax
from jax.experimental import pallas as pl
from jax.experimental.pallas import tpu as pltpu


def _make_kernel(bt, win_size, num_features, hidden_dim):
    W, F, H = win_size, num_features, hidden_dim
    BF = bt * F

    def kernel(xt_ref, wp_t_ref, w1a_t_ref, w1b_t_ref, wo_t_ref,
               ch_ref, bo_ref, gb_ref, b2_ref, out_ref, ews_ref):
        # Resident weights / packed constants (constant index_map -> fetched once).
        wp_t = wp_t_ref[...]            # [W, H]
        w1a_t = w1a_t_ref[...]          # [H, H]
        w1b_t = w1b_t_ref[...]          # [H, H]
        wo_t = wo_t_ref[...]            # [H, W]
        bp = ch_ref[0]                  # [H]
        b1 = ch_ref[1]                  # [H]
        w2 = ch_ref[2]                  # [H]
        bo = bo_ref[0]                  # [W]
        gb = gb_ref[...]                # [F, 2]  (gamma | beta) as sublane columns
        gamma = gb[:, 0:1]              # [F, 1]
        beta = gb[:, 1:2]               # [F, 1]
        b2 = b2_ref[0]                  # scalar (SMEM)

        xt = xt_ref[...]                # [bt, F, W]  (transposed orientation)
        xt_flat = xt.reshape(BF, W)     # leading-dim merge; layout-preserving for F % 8 == 0

        # ---- Batch-folded front end: one fat matmul each (M = bt*F) ----
        nf_flat = jnp.dot(xt_flat, wp_t, preferred_element_type=jnp.float32) + bp   # [bt*F, H]
        a_flat = jnp.dot(nf_flat, w1a_t, preferred_element_type=jnp.float32)        # [bt*F, H]
        b_flat = jnp.dot(nf_flat, w1b_t, preferred_element_type=jnp.float32)        # [bt*F, H]

        nf = nf_flat.reshape(bt, F, H)
        a_i = a_flat.reshape(bt, F, H)[:, :, None, :]       # [bt, F, 1, H]
        b_j = b_flat.reshape(bt, F, H)[:, None, :, :]       # [bt, 1, F, H]

        # edge_attn1(cat(nf_i, nf_j)) with W1 = [W1a | W1b], then ReLU.
        hidden = jnp.maximum(a_i + b_j + b1, 0.0)            # [bt, F, F, H]
        # edge_attn2: project H -> 1 (lane reduction; MXU form only pays off at F*F >= ~256).
        scores = jnp.sum(hidden * w2, axis=-1) + b2           # [bt, F, F]

        # Mask diagonal, softmax over the last axis.
        # NOTE: F == 1 makes every row fully masked -> NaN (matches torch).
        rows = lax.broadcasted_iota(jnp.int32, (F, F), 0)
        cols = lax.broadcasted_iota(jnp.int32, (F, F), 1)
        diag = (rows == cols)[None, :, :]
        scores = jnp.where(diag, -jnp.inf, scores)
        m = jnp.max(scores, axis=-1, keepdims=True)
        p = jnp.exp(scores - m)
        denom = jnp.sum(p, axis=-1, keepdims=True)
        r = pl.reciprocal(denom, approx=True)
        r = r * (2.0 - denom * r)                             # one Newton step
        ew = p * r                                            # [bt, F, F]

        # Sum of edge weights per node (torch: edge_weights.sum(dim=1)); one block store.
        ews_ref[...] = jnp.sum(ew, axis=1)[:, None, :]        # [bt, 1, F]

        # Message passing (batched) + output projection (fat matmul, M = bt*F).
        messages = jnp.einsum('bij,bjh->bih', ew, nf,
                              preferred_element_type=jnp.float32)        # [bt, F, H]
        out_flat = jnp.dot(messages.reshape(BF, H), wo_t,
                           preferred_element_type=jnp.float32)            # [bt*F, W]
        out3 = out_flat.reshape(bt, F, W) + bo + xt                        # + bias + residual

        # LayerNorm over the feature axis (axis=1 in the [bt, F, W] layout), fused stats.
        s1 = jnp.sum(out3, axis=1, keepdims=True)              # [bt, 1, W]
        s2 = jnp.sum(out3 * out3, axis=1, keepdims=True)       # [bt, 1, W]
        inv_f = 1.0 / F
        mean = s1 * inv_f
        var = s2 * inv_f - mean * mean
        normed = (out3 - mean) * lax.rsqrt(var + 1e-5)

        # TODO(synk): dropout is identity here (inference semantics).
        out_ref[...] = normed * gamma[None, :, :] + beta[None, :, :]       # [bt, F, W]

    return kernel


def _vmem_bytes_estimate(bt, W, F, H):
    """Rough per-step VMEM footprint (double-buffered blocks + weights + live temps)."""
    f32 = 4
    blocks = 2 * (bt * F * W) + 2 * (bt * F * W) + 2 * (bt * F)            # x in, out, ews
    weights = 2 * (W * H + 2 * H * H + H * W + 3 * H + W + 2 * F)          # resident tiles
    inter = (bt * F * F * H) + 4 * (bt * F * F) + 5 * (bt * F * H) + 4 * (bt * F * W)
    return (blocks + weights + inter) * f32


def _pick_bt(B, W, F, H, vmem_budget=24 << 20):
    """Largest bt that divides B, keeps >= 2 grid steps, and fits the VMEM budget."""
    best = 1
    for bt in range(1, B + 1):
        if B % bt:
            continue
        if B > 1 and B // bt < 2:          # keep >= 2 steps (v7x megacore / pipelining)
            continue
        if _vmem_bytes_estimate(bt, W, F, H) > vmem_budget:
            continue
        best = bt
    return best


def anomaly_graph(x, params, bt=None):
    """x: [B, W, F] float32.  Returns (out [B, W, F], edge_weights_sum [B, W, F])."""
    B, W, F = x.shape
    H = params["wp"].shape[0]
    if bt is None:
        bt = _pick_bt(B, W, F, H)
    assert B % bt == 0, "batch must be divisible by the per-step block size"

    # Layout plumbing in the wrapper (mirrors torch's x.transpose(1,2)); the
    # kernel works entirely in the [F, W] orientation so every matmul is a
    # plain [M,K]@[K,N] with M = bt*F.
    xt = jnp.transpose(x, (0, 2, 1))                       # [B, F, W]

    wp_t = params["wp"].T                                  # [W, H]
    w1a_t = params["w1"][:, :H].T                          # [H, H]
    w1b_t = params["w1"][:, H:].T                          # [H, H]
    wo_t = params["wo"].T                                  # [H, W]
    consts_h = jnp.stack([params["bp"], params["b1"],
                          params["w2"].reshape(-1)])       # [3, H]  (bp | b1 | w2)
    bo = params["bo"].reshape(1, W)                        # [1, W]
    gb = jnp.stack([params["gamma"], params["beta"]], axis=1)  # [F, 2]
    b2 = params["b2"].reshape(1)                           # scalar -> SMEM

    def fixed(shape):
        nd = len(shape)
        return pl.BlockSpec(shape, lambda b, nd=nd: (0,) * nd)

    grid_spec = pltpu.PrefetchScalarGridSpec(
        num_scalar_prefetch=0,
        grid=(B // bt,),
        in_specs=[
            pl.BlockSpec((bt, F, W), lambda b: (b, 0, 0)),        # x (transposed)
            fixed((W, H)),                                        # wp_t
            fixed((H, H)),                                        # w1a_t
            fixed((H, H)),                                        # w1b_t
            fixed((H, W)),                                        # wo_t
            fixed((3, H)),                                        # packed bp/b1/w2
            fixed((1, W)),                                        # bo
            fixed((F, 2)),                                        # packed gamma/beta
            pl.BlockSpec(memory_space=pltpu.MemorySpace.SMEM),    # b2 (scalar)
        ],
        out_specs=[
            pl.BlockSpec((bt, F, W), lambda b: (b, 0, 0)),        # out in [F, W] layout
            pl.BlockSpec((bt, 1, F), lambda b: (b, 0, 0)),        # edge-weight sums
        ],
    )

    est = _vmem_bytes_estimate(bt, W, F, H)
    vmem_limit = int(min(2 * est, 48 << 20)) if 2 * est > (16 << 20) else None

    out_fw, ews = pl.pallas_call(
        _make_kernel(bt, W, F, H),
        out_shape=(jax.ShapeDtypeStruct((B, F, W), jnp.float32),
                   jax.ShapeDtypeStruct((B, 1, F), jnp.float32)),
        grid_spec=grid_spec,
        compiler_params=pltpu.CompilerParams(
            dimension_semantics=("parallel",),
            vmem_limit_bytes=vmem_limit),
    )(xt, wp_t, w1a_t, w1b_t, wo_t, consts_h, bo, gb, b2)

    # Wrapper-side layout plumbing: transpose back and lazily broadcast ews.
    out = jnp.transpose(out_fw, (0, 2, 1))                 # [B, W, F]
    return out, jnp.broadcast_to(ews, (B, W, F))


def anomaly_graph_ref(x, params):
    """Pure-JAX reference mirroring the PyTorch forward (inference)."""
    B, W, F = x.shape
    H = params["wp"].shape[0]
    identity = x
    xt = jnp.transpose(x, (0, 2, 1))                               # [B, F, W]
    nf = xt @ params["wp"].T + params["bp"]                        # [B, F, H]
    node_i = jnp.broadcast_to(nf[:, :, None, :], (B, F, F, H))
    node_j = jnp.broadcast_to(nf[:, None, :, :], (B, F, F, H))
    pairs = jnp.concatenate([node_i, node_j], axis=-1)             # [B, F, F, 2H]
    hid = jax.nn.relu(pairs @ params["w1"].T + params["b1"])       # [B, F, F, H]
    scores = (hid @ params["w2"].T + params["b2"])[..., 0]         # [B, F, F]
    eye = jnp.eye(F, dtype=bool)[None]
    scores = jnp.where(eye, -jnp.inf, scores)
    ew = jax.nn.softmax(scores, axis=-1)
    ew_sum = ew.sum(axis=1)                                        # [B, F]
    messages = ew @ nf                                             # [B, F, H]
    out_feat = messages @ params["wo"].T + params["bo"]            # [B, F, W]
    out = jnp.transpose(out_feat, (0, 2, 1)) + identity            # [B, W, F]
    mean = out.mean(axis=-1, keepdims=True)
    var = ((out - mean) ** 2).mean(axis=-1, keepdims=True)
    out = (out - mean) * lax.rsqrt(var + 1e-5) * params["gamma"] + params["beta"]
    return out, jnp.broadcast_to(ew_sum[:, None, :], (B, W, F))


def make_params(key, win_size, num_features, hidden_dim):
    ks = jax.random.split(key, 8)
    s = 0.1
    return {
        "wp": s * jax.random.normal(ks[0], (hidden_dim, win_size), jnp.float32),
        "bp": s * jax.random.normal(ks[1], (hidden_dim,), jnp.float32),
        "w1": s * jax.random.normal(ks[2], (hidden_dim, 2 * hidden_dim), jnp.float32),
        "b1": s * jax.random.normal(ks[3], (hidden_dim,), jnp.float32),
        "w2": s * jax.random.normal(ks[4], (1, hidden_dim), jnp.float32),
        "b2": s * jax.random.normal(ks[5], (1,), jnp.float32),
        "wo": s * jax.random.normal(ks[6], (win_size, hidden_dim), jnp.float32),
        "bo": s * jax.random.normal(ks[7], (win_size,), jnp.float32),
        "gamma": jnp.ones((num_features,), jnp.float32),
        "beta": jnp.zeros((num_features,), jnp.float32),
    }


if __name__ == "__main__":
    B, W, F, H = 8, 16, 8, 32
    key = jax.random.PRNGKey(0)
    kx, kp = jax.random.split(key)
    x = jax.random.normal(kx, (B, W, F), jnp.float32)
    params = make_params(kp, W, F, H)

    out, ews = anomaly_graph(x, params)
    out, ews = jax.block_until_ready(out), jax.block_until_ready(ews)

    out_ref, ews_ref = anomaly_graph_ref(x, params)
    assert jnp.allclose(out, out_ref, rtol=1e-3, atol=1e-3), "output mismatch"
    assert jnp.allclose(ews, ews_ref, rtol=1e-3, atol=1e-3), "edge-weight-sum mismatch"

    print("KERNEL_OK")
</pallas_src>

<mosaic_0001>
module attributes {stable_mosaic.version = 11 : i64} {
  func.func @kernel(%arg0: i32, %arg1: memref<4x8x16xf32, #tpu.memory_space<vmem>>, %arg2: memref<16x32xf32, #tpu.memory_space<vmem>>, %arg3: memref<32x32xf32, #tpu.memory_space<vmem>>, %arg4: memref<32x32xf32, #tpu.memory_space<vmem>>, %arg5: memref<32x16xf32, #tpu.memory_space<vmem>>, %arg6: memref<3x32xf32, #tpu.memory_space<vmem>>, %arg7: memref<1x16xf32, #tpu.memory_space<vmem>>, %arg8: memref<8x2xf32, #tpu.memory_space<vmem>>, %arg9: memref<1xf32, #tpu.memory_space<smem>>, %arg10: memref<4x8x16xf32, #tpu.memory_space<vmem>>, %arg11: memref<4x1x8xf32, #tpu.memory_space<vmem>>) attributes {dimension_semantics = [#tpu.dimension_semantics<parallel>], iteration_bounds = array<i64: 2>, scalar_prefetch = 0 : i64, scratch_operands = 0 : i64, tpu.core_type = #tpu.core_type<tc>, window_params = [{transform_indices = @transform_0, window_bounds = array<i64: 4, 8, 16>}, {pipeline_mode = #tpu.pipeline_mode<synchronous>, transform_indices = @transform_1, window_bounds = array<i64: 16, 32>}, {pipeline_mode = #tpu.pipeline_mode<synchronous>, transform_indices = @transform_2, window_bounds = array<i64: 32, 32>}, {pipeline_mode = #tpu.pipeline_mode<synchronous>, transform_indices = @transform_3, window_bounds = array<i64: 32, 32>}, {pipeline_mode = #tpu.pipeline_mode<synchronous>, transform_indices = @transform_4, window_bounds = array<i64: 32, 16>}, {pipeline_mode = #tpu.pipeline_mode<synchronous>, transform_indices = @transform_5, window_bounds = array<i64: 3, 32>}, {pipeline_mode = #tpu.pipeline_mode<synchronous>, transform_indices = @transform_6, window_bounds = array<i64: 1, 16>}, {pipeline_mode = #tpu.pipeline_mode<synchronous>, transform_indices = @transform_7, window_bounds = array<i64: 8, 2>}, {transform_indices = @transform_8, window_bounds = array<i64: 1>}, {transform_indices = @transform_9, window_bounds = array<i64: 4, 8, 16>}, {transform_indices = @transform_10, window_bounds = array<i64: 4, 1, 8>}]} {
    %c0 = arith.constant 0 : index
    %c0_0 = arith.constant 0 : index
    %0 = vector.load %arg2[%c0, %c0_0] : memref<16x32xf32, #tpu.memory_space<vmem>>, vector<16x32xf32>
    %c0_1 = arith.constant 0 : index
    %c0_2 = arith.constant 0 : index
    %1 = vector.load %arg3[%c0_1, %c0_2] : memref<32x32xf32, #tpu.memory_space<vmem>>, vector<32x32xf32>
    %c0_3 = arith.constant 0 : index
    %c0_4 = arith.constant 0 : index
    %2 = vector.load %arg4[%c0_3, %c0_4] : memref<32x32xf32, #tpu.memory_space<vmem>>, vector<32x32xf32>
    %c0_5 = arith.constant 0 : index
    %c0_6 = arith.constant 0 : index
    %3 = vector.load %arg5[%c0_5, %c0_6] : memref<32x16xf32, #tpu.memory_space<vmem>>, vector<32x16xf32>
    %c0_7 = arith.constant 0 : index
    %c0_8 = arith.constant 0 : index
    %4 = vector.load %arg6[%c0_7, %c0_8] : memref<3x32xf32, #tpu.memory_space<vmem>>, vector<1x32xf32>
    %5 = vector.shape_cast %4 : vector<1x32xf32> to vector<32xf32>
    %c1 = arith.constant 1 : index
    %c0_9 = arith.constant 0 : index
    %6 = vector.load %arg6[%c1, %c0_9] : memref<3x32xf32, #tpu.memory_space<vmem>>, vector<1x32xf32>
    %7 = vector.shape_cast %6 : vector<1x32xf32> to vector<32xf32>
    %c2 = arith.constant 2 : index
    %c0_10 = arith.constant 0 : index
    %8 = vector.load %arg6[%c2, %c0_10] : memref<3x32xf32, #tpu.memory_space<vmem>>, vector<1x32xf32>
    %9 = vector.shape_cast %8 : vector<1x32xf32> to vector<32xf32>
    %c0_11 = arith.constant 0 : index
    %c0_12 = arith.constant 0 : index
    %10 = vector.load %arg7[%c0_11, %c0_12] : memref<1x16xf32, #tpu.memory_space<vmem>>, vector<1x16xf32>
    %11 = vector.shape_cast %10 : vector<1x16xf32> to vector<16xf32>
    %c0_13 = arith.constant 0 : index
    %c0_14 = arith.constant 0 : index
    %12 = vector.load %arg8[%c0_13, %c0_14] : memref<8x2xf32, #tpu.memory_space<vmem>>, vector<8x2xf32>
    %13 = vector.extract_strided_slice %12 {offsets = [0, 0], sizes = [8, 1], strides = [1, 1]} : vector<8x2xf32> to vector<8x1xf32>
    %14 = vector.extract_strided_slice %12 {offsets = [0, 1], sizes = [8, 1], strides = [1, 1]} : vector<8x2xf32> to vector<8x1xf32>
    %c0_15 = arith.constant 0 : index
    %15 = memref.load %arg9[%c0_15] : memref<1xf32, #tpu.memory_space<smem>>
    %c0_16 = arith.constant 0 : index
    %c0_17 = arith.constant 0 : index
    %c0_18 = arith.constant 0 : index
    %16 = vector.load %arg1[%c0_16, %c0_17, %c0_18] : memref<4x8x16xf32, #tpu.memory_space<vmem>>, vector<4x8x16xf32>
    %17 = vector.shape_cast %16 : vector<4x8x16xf32> to vector<32x16xf32>
    %cst = arith.constant dense<0.000000e+00> : vector<32x32xf32>
    %18 = tpu.matmul %17, %0, %cst {dimension_numbers = #tpu.dot_dimension_numbers<[1], [0], [0], [1], [0, 0, 1, 1], [], []>} : vector<32x16xf32>, vector<16x32xf32>, vector<32x32xf32> -> vector<32x32xf32>
    %19 = vector.shape_cast %5 : vector<32xf32> to vector<1x32xf32>
    %20 = vector.broadcast %19 : vector<1x32xf32> to vector<32x32xf32>
    %21 = arith.addf %18, %20 : vector<32x32xf32>
    %cst_19 = arith.constant dense<0.000000e+00> : vector<32x32xf32>
    %22 = tpu.matmul %21, %1, %cst_19 {dimension_numbers = #tpu.dot_dimension_numbers<[1], [0], [0], [1], [0, 0, 1, 1], [], []>} : vector<32x32xf32>, vector<32x32xf32>, vector<32x32xf32> -> vector<32x32xf32>
    %cst_20 = arith.constant dense<0.000000e+00> : vector<32x32xf32>
    %23 = tpu.matmul %21, %2, %cst_20 {dimension_numbers = #tpu.dot_dimension_numbers<[1], [0], [0], [1], [0, 0, 1, 1], [], []>} : vector<32x32xf32>, vector<32x32xf32>, vector<32x32xf32> -> vector<32x32xf32>
    %24 = vector.shape_cast %21 : vector<32x32xf32> to vector<4x8x32xf32>
    %25 = vector.shape_cast %22 : vector<32x32xf32> to vector<4x8x32xf32>
    %26 = vector.shape_cast %25 : vector<4x8x32xf32> to vector<4x8x1x32xf32>
    %27 = vector.shape_cast %23 : vector<32x32xf32> to vector<4x8x32xf32>
    %28 = vector.shape_cast %27 : vector<4x8x32xf32> to vector<4x1x8x32xf32>
    %29 = vector.broadcast %26 : vector<4x8x1x32xf32> to vector<4x8x8x32xf32>
    %30 = vector.broadcast %28 : vector<4x1x8x32xf32> to vector<4x8x8x32xf32>
    %31 = arith.addf %29, %30 : vector<4x8x8x32xf32>
    %32 = vector.shape_cast %7 : vector<32xf32> to vector<1x1x1x32xf32>
    %33 = vector.broadcast %32 : vector<1x1x1x32xf32> to vector<4x8x8x32xf32>
    %34 = arith.addf %31, %33 : vector<4x8x8x32xf32>
    %cst_21 = arith.constant 0.000000e+00 : f32
    %35 = vector.broadcast %cst_21 : f32 to vector<4x8x8x32xf32>
    %36 = arith.maximumf %34, %35 : vector<4x8x8x32xf32>
    %37 = vector.shape_cast %9 : vector<32xf32> to vector<1x1x1x32xf32>
    %38 = vector.broadcast %37 : vector<1x1x1x32xf32> to vector<4x8x8x32xf32>
    %39 = arith.mulf %36, %38 : vector<4x8x8x32xf32>
    %cst_22 = arith.constant dense<0.000000e+00> : vector<4x8x8xf32>
    %40 = vector.multi_reduction <add>, %39, %cst_22 [3] : vector<4x8x8x32xf32> to vector<4x8x8xf32>
    %41 = vector.broadcast %15 : f32 to vector<4x8x8xf32>
    %42 = arith.addf %40, %41 : vector<4x8x8xf32>
    %43 = tpu.iota {dimensions = array<i32: 0>} : vector<8x8xi32>
    %44 = tpu.iota {dimensions = array<i32: 1>} : vector<8x8xi32>
    %45 = arith.cmpi eq, %43, %44 : vector<8x8xi32>
    %46 = vector.shape_cast %45 : vector<8x8xi1> to vector<1x8x8xi1>
    %cst_23 = arith.constant 0xFF800000 : f32
    %47 = vector.shape_cast %46 : vector<1x8x8xi1> to vector<1x8x8xi1>
    %48 = vector.broadcast %47 : vector<1x8x8xi1> to vector<4x8x8xi1>
    %49 = vector.broadcast %cst_23 : f32 to vector<4x8x8xf32>
    %50 = arith.select %48, %49, %42 : vector<4x8x8xi1>, vector<4x8x8xf32>
    %cst_24 = arith.constant dense<0xFF800000> : vector<4x8xf32>
    %51 = vector.multi_reduction <maximumf>, %50, %cst_24 [2] : vector<4x8x8xf32> to vector<4x8xf32>
    %52 = vector.shape_cast %51 : vector<4x8xf32> to vector<4x8x1xf32>
    %53 = vector.broadcast %52 : vector<4x8x1xf32> to vector<4x8x8xf32>
    %54 = arith.subf %50, %53 : vector<4x8x8xf32>
    %55 = math.exp %54 : vector<4x8x8xf32>
    %cst_25 = arith.constant dense<0.000000e+00> : vector<4x8xf32>
    %56 = vector.multi_reduction <add>, %55, %cst_25 [2] : vector<4x8x8xf32> to vector<4x8xf32>
    %57 = vector.shape_cast %56 : vector<4x8xf32> to vector<4x8x1xf32>
    %58 = tpu.reciprocal %57 {approx = true} : vector<4x8x1xf32> -> vector<4x8x1xf32>
    %59 = arith.mulf %57, %58 : vector<4x8x1xf32>
    %cst_26 = arith.constant 2.000000e+00 : f32
    %60 = vector.broadcast %cst_26 : f32 to vector<4x8x1xf32>
    %61 = arith.subf %60, %59 : vector<4x8x1xf32>
    %62 = arith.mulf %58, %61 : vector<4x8x1xf32>
    %63 = vector.broadcast %62 : vector<4x8x1xf32> to vector<4x8x8xf32>
    %64 = arith.mulf %55, %63 : vector<4x8x8xf32>
    %cst_27 = arith.constant dense<0.000000e+00> : vector<4x8xf32>
    %65 = vector.multi_reduction <add>, %64, %cst_27 [1] : vector<4x8x8xf32> to vector<4x8xf32>
    %66 = vector.shape_cast %65 : vector<4x8xf32> to vector<4x1x8xf32>
    %c0_28 = arith.constant 0 : index
    %c0_29 = arith.constant 0 : index
    %c0_30 = arith.constant 0 : index
    %67 = vector.load %arg11[%c0_28, %c0_29, %c0_30] : memref<4x1x8xf32, #tpu.memory_space<vmem>>, vector<4x1x8xf32>
    tpu.vector_store %arg11[%c0_28, %c0_29, %c0_30], %66 {strides = array<i32>} : memref<4x1x8xf32, #tpu.memory_space<vmem>>, vector<4x1x8xf32>,
    "tpu.trace_start"() <{level = 10 : i32, message = "bij,bjh->bih"}> : () -> ()
    %cst_31 = arith.constant dense<0.000000e+00> : vector<4x8x32xf32>
    %68 = tpu.matmul %64, %24, %cst_31 {dimension_numbers = #tpu.dot_dimension_numbers<[2], [1], [1], [2], [0, 0, 0, 1, 1, 2], [0], [0]>} : vector<4x8x8xf32>, vector<4x8x32xf32>, vector<4x8x32xf32> -> vector<4x8x32xf32>
    "tpu.trace_stop"() : () -> ()
    %69 = vector.shape_cast %68 : vector<4x8x32xf32> to vector<32x32xf32>
    %cst_32 = arith.constant dense<0.000000e+00> : vector<32x16xf32>
    %70 = tpu.matmul %69, %3, %cst_32 {dimension_numbers = #tpu.dot_dimension_numbers<[1], [0], [0], [1], [0, 0, 1, 1], [], []>} : vector<32x32xf32>, vector<32x16xf32>, vector<32x16xf32> -> vector<32x16xf32>
    %71 = vector.shape_cast %70 : vector<32x16xf32> to vector<4x8x16xf32>
    %72 = vector.shape_cast %11 : vector<16xf32> to vector<1x1x16xf32>
    %73 = vector.broadcast %72 : vector<1x1x16xf32> to vector<4x8x16xf32>
    %74 = arith.addf %71, %73 : vector<4x8x16xf32>
    %75 = arith.addf %74, %16 : vector<4x8x16xf32>
    %cst_33 = arith.constant dense<0.000000e+00> : vector<4x16xf32>
    %76 = vector.multi_reduction <add>, %75, %cst_33 [1] : vector<4x8x16xf32> to vector<4x16xf32>
    %77 = vector.shape_cast %76 : vector<4x16xf32> to vector<4x1x16xf32>
    %78 = arith.mulf %75, %75 : vector<4x8x16xf32>
    %cst_34 = arith.constant dense<0.000000e+00> : vector<4x16xf32>
    %79 = vector.multi_reduction <add>, %78, %cst_34 [1] : vector<4x8x16xf32> to vector<4x16xf32>
    %80 = vector.shape_cast %79 : vector<4x16xf32> to vector<4x1x16xf32>
    %cst_35 = arith.constant 1.250000e-01 : f32
    %81 = vector.broadcast %cst_35 : f32 to vector<4x1x16xf32>
    %82 = arith.mulf %77, %81 : vector<4x1x16xf32>
    %cst_36 = arith.constant 1.250000e-01 : f32
    %83 = vector.broadcast %cst_36 : f32 to vector<4x1x16xf32>
    %84 = arith.mulf %80, %83 : vector<4x1x16xf32>
    %85 = arith.mulf %82, %82 : vector<4x1x16xf32>
    %86 = arith.subf %84, %85 : vector<4x1x16xf32>
    %87 = vector.broadcast %82 : vector<4x1x16xf32> to vector<4x8x16xf32>
    %88 = arith.subf %75, %87 : vector<4x8x16xf32>
    %cst_37 = arith.constant 9.99999974E-6 : f32
    %89 = vector.broadcast %cst_37 : f32 to vector<4x1x16xf32>
    %90 = arith.addf %86, %89 : vector<4x1x16xf32>
    %91 = math.rsqrt %90 : vector<4x1x16xf32>
    %92 = vector.broadcast %91 : vector<4x1x16xf32> to vector<4x8x16xf32>
    %93 = arith.mulf %88, %92 : vector<4x8x16xf32>
    %94 = vector.shape_cast %13 : vector<8x1xf32> to vector<1x8x1xf32>
    %95 = vector.broadcast %94 : vector<1x8x1xf32> to vector<4x8x16xf32>
    %96 = arith.mulf %93, %95 : vector<4x8x16xf32>
    %97 = vector.shape_cast %14 : vector<8x1xf32> to vector<1x8x1xf32>
    %98 = vector.broadcast %97 : vector<1x8x1xf32> to vector<4x8x16xf32>
    %99 = arith.addf %96, %98 : vector<4x8x16xf32>
    %c0_38 = arith.constant 0 : index
    %c0_39 = arith.constant 0 : index
    %c0_40 = arith.constant 0 : index
    %100 = vector.load %arg10[%c0_38, %c0_39, %c0_40] : memref<4x8x16xf32, #tpu.memory_space<vmem>>, vector<4x8x16xf32>
    tpu.vector_store %arg10[%c0_38, %c0_39, %c0_40], %99 {strides = array<i32>} : memref<4x8x16xf32, #tpu.memory_space<vmem>>, vector<4x8x16xf32>,
    return
  }
  func.func @transform_0(%arg0: i32) -> (i32, i32, i32) {
    %c0_i32 = arith.constant 0 : i32
    %c0_i32_0 = arith.constant 0 : i32
    %c0_i32_1 = arith.constant 0 : i32
    return %arg0, %c0_i32, %c0_i32_0 : i32, i32, i32
  }
  func.func @transform_1(%arg0: i32) -> (i32, i32) {
    %c0_i32 = arith.constant 0 : i32
    %c0_i32_0 = arith.constant 0 : i32
    %c0_i32_1 = arith.constant 0 : i32
    return %c0_i32, %c0_i32_0 : i32, i32
  }
  func.func @transform_2(%arg0: i32) -> (i32, i32) {
    %c0_i32 = arith.constant 0 : i32
    %c0_i32_0 = arith.constant 0 : i32
    %c0_i32_1 = arith.constant 0 : i32
    return %c0_i32, %c0_i32_0 : i32, i32
  }
  func.func @transform_3(%arg0: i32) -> (i32, i32) {
    %c0_i32 = arith.constant 0 : i32
    %c0_i32_0 = arith.constant 0 : i32
    %c0_i32_1 = arith.constant 0 : i32
    return %c0_i32, %c0_i32_0 : i32, i32
  }
  func.func @transform_4(%arg0: i32) -> (i32, i32) {
    %c0_i32 = arith.constant 0 : i32
    %c0_i32_0 = arith.constant 0 : i32
    %c0_i32_1 = arith.constant 0 : i32
    return %c0_i32, %c0_i32_0 : i32, i32
  }
  func.func @transform_5(%arg0: i32) -> (i32, i32) {
    %c0_i32 = arith.constant 0 : i32
    %c0_i32_0 = arith.constant 0 : i32
    %c0_i32_1 = arith.constant 0 : i32
    return %c0_i32, %c0_i32_0 : i32, i32
  }
  func.func @transform_6(%arg0: i32) -> (i32, i32) {
    %c0_i32 = arith.constant 0 : i32
    %c0_i32_0 = arith.constant 0 : i32
    %c0_i32_1 = arith.constant 0 : i32
    return %c0_i32, %c0_i32_0 : i32, i32
  }
  func.func @transform_7(%arg0: i32) -> (i32, i32) {
    %c0_i32 = arith.constant 0 : i32
    %c0_i32_0 = arith.constant 0 : i32
    %c0_i32_1 = arith.constant 0 : i32
    return %c0_i32, %c0_i32_0 : i32, i32
  }
  func.func @transform_8(%arg0: i32) -> i32 {
    %c0_i32 = arith.constant 0 : i32
    %c0_i32_0 = arith.constant 0 : i32
    return %c0_i32 : i32
  }
  func.func @transform_9(%arg0: i32) -> (i32, i32, i32) {
    %c0_i32 = arith.constant 0 : i32
    %c0_i32_0 = arith.constant 0 : i32
    %c0_i32_1 = arith.constant 0 : i32
    return %arg0, %c0_i32, %c0_i32_0 : i32, i32, i32
  }
  func.func @transform_10(%arg0: i32) -> (i32, i32, i32) {
    %c0_i32 = arith.constant 0 : i32
    %c0_i32_0 = arith.constant 0 : i32
    %c0_i32_1 = arith.constant 0 : i32
    return %arg0, %c0_i32, %c0_i32_0 : i32, i32, i32
  }
}

</mosaic_0001>

<llo_original>
// kernel: tpu_custom_call.1
$region0: #{tpu_custom_call.1}
  #allocation0 [shape = 'u32[]', space=smem, size = 0x4, offset = 0x4, fixed_abs, tag = 'smem constant byte address 0x4 - core index']
  #allocation1 [shape = 'u32[144,128]{1,0:T(1,128)}', space=vmem, size = 0x12000, scoped, tag = 'internal scratch']
  #allocation2 [shape = 'f32[1]{0:T(128)S(6)}', space=smem, size = 0x200, scoped, tag = 'scoped memory for tpu_custom_call.1']
  %s0 = inlined_call_operand.hbm [shape: f32[8,8,16], index: 0, kind: input, shape index: {}]
  %s1 = inlined_call_operand.hbm [shape: f32[16,32], index: 1, kind: input, shape index: {}]
  %s2 = inlined_call_operand.vmem [shape: f32[32,32], index: 2, kind: input, shape index: {}]
  %s3 = inlined_call_operand.vmem [shape: f32[32,32], index: 3, kind: input, shape index: {}]
  %s4 = inlined_call_operand.vmem [shape: f32[32,16], index: 4, kind: input, shape index: {}]
  %s5 = inlined_call_operand.vmem [shape: f32[3,32], index: 5, kind: input, shape index: {}]
  %s6 = inlined_call_operand.vmem [shape: f32[1,16], index: 6, kind: input, shape index: {}]
  %s7 = inlined_call_operand.vmem [shape: f32[8,2], index: 7, kind: input, shape index: {}]
  %s8 = inlined_call_operand.<no memory space> [shape: f32[1], index: 8, kind: input, shape index: {}]
  %s9 = inlined_call_operand.hbm [shape: f32[8,8,16], index: 9, kind: output, shape index: {0}]
  %s10 = inlined_call_operand.hbm [shape: f32[8,1,8], index: 10, kind: output, shape index: {1}]
  %11 = xla_tuple %s9, %s10
  %s12 = sld [smem:[#allocation0]]
  $region85: #{tpu_custom_call.1} parent=0
    _
  %s14 = ssub.s32 1, %s12
  %s15 = scalar_select 0, %s14, %s12
  %16 = sst [smem:[#allocation2]] %s8
  $region1: #{tpu_custom_call.1} parent=0
    #allocation3 [shape = 'u8[32768]{0}', space=vmem, size = 0x8000, scoped, tag = 'input window, operand 0']
    #allocation4 [shape = 's32[2]{0}', space=sflag, size = 0x8, scoped, tag = 'scoped memory for tpu_custom_call.1']
    #allocation5 [shape = 's32[2]{0}', space=sflag, size = 0x8, scoped, tag = 'scoped memory for tpu_custom_call.1']
    #allocation6 [shape = 'u8[8192]{0}', space=vmem, size = 0x2000, scoped, tag = 'input window, operand 1, single buffered']
    #allocation7 [shape = 's32[1]{0}', space=sflag, size = 0x4, scoped, tag = 'scoped memory for tpu_custom_call.1']
    #allocation8 [shape = 'u8[32768]{0}', space=vmem, size = 0x8000, scoped, tag = 'output window, operand 0']
    #allocation9 [shape = 'u8[4096]{0}', space=vmem, size = 0x1000, scoped, tag = 'output window, operand 1']
    #allocation10 [shape = 's32[2]{0}', space=sflag, size = 0x8, scoped, tag = 'scoped memory for tpu_custom_call.1']
    %17 = vsyncpa [#allocation4], 0
    %s18 = scalar_lea.sflag [#allocation4], 1
    %19 = vsyncpa %s18, 0
    %20 = vsyncpa [#allocation7], 0
    %21 = vsyncpa [#allocation5], 0
    %s22 = scalar_lea.sflag [#allocation5], 1
    %23 = vsyncpa %s22, 0
    %24 = vsyncpa [#allocation10], 0
    %s25 = scalar_lea.sflag [#allocation10], 1
    %26 = vsyncpa %s25, 0
    loop: start=0, step=1, limit=4
    $region2: #{tpu_custom_call.1} parent=1 // loop_pre_header
      _
    $region3: #{tpu_custom_call.1} parent=1 // loop_header
      %s28 = sphi 0, %s32
      %p29 = scmp.ge.s32.totalorder %s28, 4
      %s38 = sphi 0, %s40
      %s41 = sphi 0, %s38
      %s42 = sphi 0, %s41
      %s58 = sphi 0, %s42
      %s62 = sphi 0, %s62
      %s64 = sphi 0, %s62
      %s65 = sphi 0, %s64
      %s79 = sphi 0, %s65
      %s83 = sphi 0, %s83
      %s85 = sphi 0, %s83
      %s86 = sphi 0, %s85
      %s100 = sphi 0, %s86
      %s104 = sphi 0, %s104
      %s106 = sphi 0, %s104
      %s107 = sphi 0, %s106
      %s121 = sphi 0, %s107
      %s125 = sphi 0, %s125
      %s127 = sphi 0, %s125
      %s128 = sphi 0, %s127
      %s142 = sphi 0, %s128
      %s146 = sphi 0, %s146
      %s148 = sphi 0, %s146
      %s149 = sphi 0, %s148
      %s163 = sphi 0, %s149
      %s167 = sphi 0, %s167
      %s169 = sphi 0, %s167
      %s170 = sphi 0, %s169
      %s184 = sphi 0, %s170
      %s188 = sphi 0, %s188
      %s190 = sphi 0, %s188
      %s191 = sphi 0, %s190
      %s205 = sphi 0, %s191
      %s209 = sphi 0, %s209
      %s211 = sphi 0, %s209
      %s212 = sphi 0, %s211
      %s226 = sphi 0, %s212
      %s232 = sphi 0, %s234
      %s235 = sphi 0, %s232
      %s236 = sphi 0, %s235
      %s252 = sphi 0, %s236
      %s258 = sphi 0, %s260
      %s261 = sphi 0, %s258
      %s262 = sphi 0, %s261
      %s278 = sphi 0, %s262
    $region4: #{tpu_custom_call.1} parent=1 // loop_header_branch
      %31 = sbr.rel (%p29) target = $region8
    $region5: #{tpu_custom_call.1} parent=1 // loop_body
      %s33 = ssub.s32 %s28, 1
      %s34 = ssub.s32 %s28, 2
      %s35 = sadd.s32 %s28, 1
      %s36 = ssub.s32 %s28, %s35
      %p37 = scmp.eq.s32.totalorder %s36, 0
      %s39 = sadd.s32 %s38, 1
      %s40 = scalar_select %p37, %s38, %s39
      %p43 = pneg %p37
      %p44 = scmp.eq.s32.totalorder %s28, 1
      %p45 = por %p43, %p44
      %p46 = scmp.ne.s32.totalorder %s38, %s41
      %p47 = scmp.eq.s32.totalorder %s28, 0
      %p48 = por %p46, %p47
      %p49 = scmp.ne.s32.totalorder %s38, %s41
      %p50 = scmp.eq.s32.totalorder %s33, 1
      %p51 = por %p49, %p50
      %p52 = scmp.ne.s32.totalorder %s41, %s42
      %p53 = scmp.eq.s32.totalorder %s33, 0
      %p54 = por %p52, %p53
      %p55 = scmp.ne.s32.totalorder %s41, %s42
      %p56 = scmp.eq.s32.totalorder %s34, 1
      %p57 = por %p55, %p56
      %p59 = scmp.ne.s32.totalorder %s42, %s58
      %p60 = scmp.eq.s32.totalorder %s34, 0
      %p61 = por %p59, %p60
      %s63 = sadd.s32 %s62, 1
      %p66 = scmp.eq.s32.totalorder %s28, 1
      %p67 = scmp.ne.s32.totalorder %s62, %s64
      %p68 = scmp.eq.s32.totalorder %s28, 0
      %p69 = por %p67, %p68
      %p70 = scmp.ne.s32.totalorder %s62, %s64
      %p71 = scmp.eq.s32.totalorder %s33, 1
      %p72 = por %p70, %p71
      %p73 = scmp.ne.s32.totalorder %s64, %s65
      %p74 = scmp.eq.s32.totalorder %s33, 0
      %p75 = por %p73, %p74
      %p76 = scmp.ne.s32.totalorder %s64, %s65
      %p77 = scmp.eq.s32.totalorder %s34, 1
      %p78 = por %p76, %p77
      %p80 = scmp.ne.s32.totalorder %s65, %s79
      %p81 = scmp.eq.s32.totalorder %s34, 0
      %p82 = por %p80, %p81
      %s84 = sadd.s32 %s83, 1
      %p87 = scmp.eq.s32.totalorder %s28, 1
      %p88 = scmp.ne.s32.totalorder %s83, %s85
      %p89 = scmp.eq.s32.totalorder %s28, 0
      %p90 = por %p88, %p89
      %p91 = scmp.ne.s32.totalorder %s83, %s85
      %p92 = scmp.eq.s32.totalorder %s33, 1
      %p93 = por %p91, %p92
      %p94 = scmp.ne.s32.totalorder %s85, %s86
      %p95 = scmp.eq.s32.totalorder %s33, 0
      %p96 = por %p94, %p95
      %p97 = scmp.ne.s32.totalorder %s85, %s86
      %p98 = scmp.eq.s32.totalorder %s34, 1
      %p99 = por %p97, %p98
      %p101 = scmp.ne.s32.totalorder %s86, %s100
      %p102 = scmp.eq.s32.totalorder %s34, 0
      %p103 = por %p101, %p102
      %s105 = sadd.s32 %s104, 1
      %p108 = scmp.eq.s32.totalorder %s28, 1
      %p109 = scmp.ne.s32.totalorder %s104, %s106
      %p110 = scmp.eq.s32.totalorder %s28, 0
      %p111 = por %p109, %p110
      %p112 = scmp.ne.s32.totalorder %s104, %s106
      %p113 = scmp.eq.s32.totalorder %s33, 1
      %p114 = por %p112, %p113
      %p115 = scmp.ne.s32.totalorder %s106, %s107
      %p116 = scmp.eq.s32.totalorder %s33, 0
      %p117 = por %p115, %p116
      %p118 = scmp.ne.s32.totalorder %s106, %s107
      %p119 = scmp.eq.s32.totalorder %s34, 1
      %p120 = por %p118, %p119
      %p122 = scmp.ne.s32.totalorder %s107, %s121
      %p123 = scmp.eq.s32.totalorder %s34, 0
      %p124 = por %p122, %p123
      %s126 = sadd.s32 %s125, 1
      %p129 = scmp.eq.s32.totalorder %s28, 1
      %p130 = scmp.ne.s32.totalorder %s125, %s127
      %p131 = scmp.eq.s32.totalorder %s28, 0
      %p132 = por %p130, %p131
      %p133 = scmp.ne.s32.totalorder %s125, %s127
      %p134 = scmp.eq.s32.totalorder %s33, 1
      %p135 = por %p133, %p134
      %p136 = scmp.ne.s32.totalorder %s127, %s128
      %p137 = scmp.eq.s32.totalorder %s33, 0
      %p138 = por %p136, %p137
      %p139 = scmp.ne.s32.totalorder %s127, %s128
      %p140 = scmp.eq.s32.totalorder %s34, 1
      %p141 = por %p139, %p140
      %p143 = scmp.ne.s32.totalorder %s128, %s142
      %p144 = scmp.eq.s32.totalorder %s34, 0
      %p145 = por %p143, %p144
      %s147 = sadd.s32 %s146, 1
      %p150 = scmp.eq.s32.totalorder %s28, 1
      %p151 = scmp.ne.s32.totalorder %s146, %s148
      %p152 = scmp.eq.s32.totalorder %s28, 0
      %p153 = por %p151, %p152
      %p154 = scmp.ne.s32.totalorder %s146, %s148
      %p155 = scmp.eq.s32.totalorder %s33, 1
      %p156 = por %p154, %p155
      %p157 = scmp.ne.s32.totalorder %s148, %s149
      %p158 = scmp.eq.s32.totalorder %s33, 0
      %p159 = por %p157, %p158
      %p160 = scmp.ne.s32.totalorder %s148, %s149
      %p161 = scmp.eq.s32.totalorder %s34, 1
      %p162 = por %p160, %p161
      %p164 = scmp.ne.s32.totalorder %s149, %s163
      %p165 = scmp.eq.s32.totalorder %s34, 0
      %p166 = por %p164, %p165
      %s168 = sadd.s32 %s167, 1
      %p171 = scmp.eq.s32.totalorder %s28, 1
      %p172 = scmp.ne.s32.totalorder %s167, %s169
      %p173 = scmp.eq.s32.totalorder %s28, 0
      %p174 = por %p172, %p173
      %p175 = scmp.ne.s32.totalorder %s167, %s169
      %p176 = scmp.eq.s32.totalorder %s33, 1
      %p177 = por %p175, %p176
      %p178 = scmp.ne.s32.totalorder %s169, %s170
      %p179 = scmp.eq.s32.totalorder %s33, 0
      %p180 = por %p178, %p179
      %p181 = scmp.ne.s32.totalorder %s169, %s170
      %p182 = scmp.eq.s32.totalorder %s34, 1
      %p183 = por %p181, %p182
      %p185 = scmp.ne.s32.totalorder %s170, %s184
      %p186 = scmp.eq.s32.totalorder %s34, 0
      %p187 = por %p185, %p186
      %s189 = sadd.s32 %s188, 1
      %p192 = scmp.eq.s32.totalorder %s28, 1
      %p193 = scmp.ne.s32.totalorder %s188, %s190
      %p194 = scmp.eq.s32.totalorder %s28, 0
      %p195 = por %p193, %p194
      %p196 = scmp.ne.s32.totalorder %s188, %s190
      %p197 = scmp.eq.s32.totalorder %s33, 1
      %p198 = por %p196, %p197
      %p199 = scmp.ne.s32.totalorder %s190, %s191
      %p200 = scmp.eq.s32.totalorder %s33, 0
      %p201 = por %p199, %p200
      %p202 = scmp.ne.s32.totalorder %s190, %s191
      %p203 = scmp.eq.s32.totalorder %s34, 1
      %p204 = por %p202, %p203
      %p206 = scmp.ne.s32.totalorder %s191, %s205
      %p207 = scmp.eq.s32.totalorder %s34, 0
      %p208 = por %p206, %p207
      %s210 = sadd.s32 %s209, 1
      %p213 = scmp.eq.s32.totalorder %s28, 1
      %p214 = scmp.ne.s32.totalorder %s209, %s211
      %p215 = scmp.eq.s32.totalorder %s28, 0
      %p216 = por %p214, %p215
      %p217 = scmp.ne.s32.totalorder %s209, %s211
      %p218 = scmp.eq.s32.totalorder %s33, 1
      %p219 = por %p217, %p218
      %p220 = scmp.ne.s32.totalorder %s211, %s212
      %p221 = scmp.eq.s32.totalorder %s33, 0
      %p222 = por %p220, %p221
      %p223 = scmp.ne.s32.totalorder %s211, %s212
      %p224 = scmp.eq.s32.totalorder %s34, 1
      %p225 = por %p223, %p224
      %p227 = scmp.ne.s32.totalorder %s212, %s226
      %p228 = scmp.eq.s32.totalorder %s34, 0
      %p229 = por %p227, %p228
      %s230 = ssub.s32 %s28, %s35
      %p231 = scmp.eq.s32.totalorder %s230, 0
      %s233 = sadd.s32 %s232, 1
      %s234 = scalar_select %p231, %s232, %s233
      %p237 = pneg %p231
      %p238 = scmp.eq.s32.totalorder %s28, 1
      %p239 = por %p237, %p238
      %p240 = scmp.ne.s32.totalorder %s232, %s235
      %p241 = scmp.eq.s32.totalorder %s28, 0
      %p242 = por %p240, %p241
      %p243 = scmp.ne.s32.totalorder %s232, %s235
      %p244 = scmp.eq.s32.totalorder %s33, 1
      %p245 = por %p243, %p244
      %p246 = scmp.ne.s32.totalorder %s235, %s236
      %p247 = scmp.eq.s32.totalorder %s33, 0
      %p248 = por %p246, %p247
      %p249 = scmp.ne.s32.totalorder %s235, %s236
      %p250 = scmp.eq.s32.totalorder %s34, 1
      %p251 = por %p249, %p250
      %p253 = scmp.ne.s32.totalorder %s236, %s252
      %p254 = scmp.eq.s32.totalorder %s34, 0
      %p255 = por %p253, %p254
      %s256 = ssub.s32 %s28, %s35
      %p257 = scmp.eq.s32.totalorder %s256, 0
      %s259 = sadd.s32 %s258, 1
      %s260 = scalar_select %p257, %s258, %s259
      %p263 = pneg %p257
      %p264 = scmp.eq.s32.totalorder %s28, 1
      %p265 = por %p263, %p264
      %p266 = scmp.ne.s32.totalorder %s258, %s261
      %p267 = scmp.eq.s32.totalorder %s28, 0
      %p268 = por %p266, %p267
      %p269 = scmp.ne.s32.totalorder %s258, %s261
      %p270 = scmp.eq.s32.totalorder %s33, 1
      %p271 = por %p269, %p270
      %p272 = scmp.ne.s32.totalorder %s261, %s262
      %p273 = scmp.eq.s32.totalorder %s33, 0
      %p274 = por %p272, %p273
      %p275 = scmp.ne.s32.totalorder %s261, %s262
      %p276 = scmp.eq.s32.totalorder %s34, 1
      %p277 = por %p275, %p276
      %p279 = scmp.ne.s32.totalorder %s262, %s278
      %p280 = scmp.eq.s32.totalorder %s34, 0
      %p281 = por %p279, %p280
      %p282 = scmp.le.s32.totalorder 1, %s28
      %p283 = scmp.lt.s32.totalorder %s28, 3
      %p284 = pnand %p282, %p283
      %p285 = pneg %p284
      // Predicated region
      $region9: #{tpu_custom_call.1} parent=5 // pred_check
        _
      $region10: #{tpu_custom_call.1} parent=5 // pred_check_branch
        %287 = sbr.rel (%p284) target = $region12
      $region11: #{tpu_custom_call.1} parent=5 // pred_region
        %s288 = ssub.s32 %s28, 1
        // Predicated region
        $region13: #{tpu_custom_call.1} parent=11 // pred_check
          %p289 = pneg %p75
        $region14: #{tpu_custom_call.1} parent=11 // pred_check_branch
          %291 = sbr.rel (%p289) target = $region16
        $region15: #{tpu_custom_call.1} parent=11 // pred_region
          %s293 = ssub.s32 256, 256
          %294 = vsyncadd [#allocation7], %s293
          %s295 = sshll.u32 [#allocation6], 4
          %s296 = int_to_ptr.vmem [resolvable:$true] %s295
          %301 = dma.hbm_to_vmem [thread:$0]  %s1, 256, %s296, [#allocation7], 128, 128, 8
        $region16: #{tpu_custom_call.1} parent=11 // pred_fallthru
          _
        // Predicated region
        $region17: #{tpu_custom_call.1} parent=11 // pred_check
          %p302 = pneg %p96
        $region18: #{tpu_custom_call.1} parent=11 // pred_check_branch
          %304 = sbr.rel (%p302) target = $region20
        $region19: #{tpu_custom_call.1} parent=11 // pred_region
          _
        $region20: #{tpu_custom_call.1} parent=11 // pred_fallthru
          _
        // Predicated region
        $region21: #{tpu_custom_call.1} parent=11 // pred_check
          %p305 = pneg %p117
        $region22: #{tpu_custom_call.1} parent=11 // pred_check_branch
          %307 = sbr.rel (%p305) target = $region24
        $region23: #{tpu_custom_call.1} parent=11 // pred_region
          _
        $region24: #{tpu_custom_call.1} parent=11 // pred_fallthru
          _
        // Predicated region
        $region25: #{tpu_custom_call.1} parent=11 // pred_check
          %p308 = pneg %p138
        $region26: #{tpu_custom_call.1} parent=11 // pred_check_branch
          %310 = sbr.rel (%p308) target = $region28
        $region27: #{tpu_custom_call.1} parent=11 // pred_region
          _
        $region28: #{tpu_custom_call.1} parent=11 // pred_fallthru
          _
        // Predicated region
        $region29: #{tpu_custom_call.1} parent=11 // pred_check
          %p311 = pneg %p159
        $region30: #{tpu_custom_call.1} parent=11 // pred_check_branch
          %313 = sbr.rel (%p311) target = $region32
        $region31: #{tpu_custom_call.1} parent=11 // pred_region
          _
        $region32: #{tpu_custom_call.1} parent=11 // pred_fallthru
          _
        // Predicated region
        $region33: #{tpu_custom_call.1} parent=11 // pred_check
          %p314 = pneg %p180
        $region34: #{tpu_custom_call.1} parent=11 // pred_check_branch
          %316 = sbr.rel (%p314) target = $region36
        $region35: #{tpu_custom_call.1} parent=11 // pred_region
          _
        $region36: #{tpu_custom_call.1} parent=11 // pred_fallthru
          _
        // Predicated region
        $region37: #{tpu_custom_call.1} parent=11 // pred_check
          %p317 = pneg %p201
        $region38: #{tpu_custom_call.1} parent=11 // pred_check_branch
          %319 = sbr.rel (%p317) target = $region40
        $region39: #{tpu_custom_call.1} parent=11 // pred_region
          _
        $region40: #{tpu_custom_call.1} parent=11 // pred_fallthru
          _
        // Predicated region
        $region41: #{tpu_custom_call.1} parent=11 // pred_check
          %p320 = pneg %p222
        $region42: #{tpu_custom_call.1} parent=11 // pred_check_branch
          %322 = sbr.rel (%p320) target = $region44
        $region43: #{tpu_custom_call.1} parent=11 // pred_region
          _
        $region44: #{tpu_custom_call.1} parent=11 // pred_fallthru
          _
      $region12: #{tpu_custom_call.1} parent=5 // pred_fallthru
        _
      %p323 = scmp.lt.s32.totalorder %s28, 2
      // Predicated region
      $region45: #{tpu_custom_call.1} parent=5 // pred_check
        %p324 = pneg %p323
      $region46: #{tpu_custom_call.1} parent=5 // pred_check_branch
        %326 = sbr.rel (%p324) target = $region48
      $region47: #{tpu_custom_call.1} parent=5 // pred_region
        // Predicated region
        $region49: #{tpu_custom_call.1} parent=47 // pred_check
          %p327 = pneg %p48
        $region50: #{tpu_custom_call.1} parent=47 // pred_check_branch
          %329 = sbr.rel (%p327) target = $region52
        $region51: #{tpu_custom_call.1} parent=47 // pred_region
          %s330 = sand.u32 %s38, 1
          %s331 = scalar_lea.sflag [#allocation4], %s330
          %s332 = sand.u32 %s38, 1
          %s333 = smul.addr %s332, 32
          %s334 = scalar_lea.vmem [#allocation3], %s333
          %s335 = smul.u32 4, %s28
          %s337 = ssub.s32 512, 512
          %338 = vsyncadd %s331, %s337
          %s339 = smul.addr %s335, 128
          %s340 = scalar_lea.hbm %s0, %s339
          %s341 = sshll.u32 %s334, 4
          %s342 = int_to_ptr.vmem [resolvable:$true] %s341
          %347 = dma.hbm_to_vmem [thread:$0]  %s340, 512, %s342, %s331, 128, 128, 8
        $region52: #{tpu_custom_call.1} parent=47 // pred_fallthru
          _
      $region48: #{tpu_custom_call.1} parent=5 // pred_fallthru
        _
      %p348 = scmp.le.s32.totalorder 1, %s28
      %p349 = scmp.lt.s32.totalorder %s28, 3
      %p350 = pnand %p348, %p349
      %p351 = pneg %p350
      // Predicated region
      $region53: #{tpu_custom_call.1} parent=5 // pred_check
        _
      $region54: #{tpu_custom_call.1} parent=5 // pred_check_branch
        %353 = sbr.rel (%p350) target = $region56
      $region55: #{tpu_custom_call.1} parent=5 // pred_region
        %s354 = ssub.s32 %s28, 1
        %s355 = sand.u32 %s41, 1
        %s356 = scalar_lea.sflag [#allocation4], %s355
        %s357 = sand.u32 %s41, 1
        %s358 = smul.addr %s357, 32
        %s359 = scalar_lea.vmem [#allocation3], %s358
        // Predicated region
        $region57: #{tpu_custom_call.1} parent=55 // pred_check
          %p360 = pneg %p54
        $region58: #{tpu_custom_call.1} parent=55 // pred_check_branch
          %362 = sbr.rel (%p360) target = $region60
        $region59: #{tpu_custom_call.1} parent=55 // pred_region
          %363 = dma.done %s356, 512
        $region60: #{tpu_custom_call.1} parent=55 // pred_fallthru
          _
        // Predicated region
        $region61: #{tpu_custom_call.1} parent=55 // pred_check
          %p364 = pneg %p75
        $region62: #{tpu_custom_call.1} parent=55 // pred_check_branch
          %366 = sbr.rel (%p364) target = $region64
        $region63: #{tpu_custom_call.1} parent=55 // pred_region
          %367 = dma.done [#allocation7], 256
        $region64: #{tpu_custom_call.1} parent=55 // pred_fallthru
          _
        %s368 = sand.u32 %s41, 1
        %s369 = scalar_lea.sflag [#allocation4], %s368
        %s370 = sand.u32 %s41, 1
        %s371 = smul.addr %s370, 32
        %s372 = scalar_lea.vmem [#allocation3], %s371
        %p373 = pneg %p54
        %p374 = pneg %p51
        %p375 = pneg %p75
        %p376 = pneg %p72
        %p377 = pneg %p96
        %p378 = pneg %p93
        %p379 = pneg %p117
        %p380 = pneg %p114
        %p381 = pneg %p138
        %p382 = pneg %p135
        %p383 = pneg %p159
        %p384 = pneg %p156
        %p385 = pneg %p180
        %p386 = pneg %p177
        %p387 = pneg %p201
        %p388 = pneg %p198
        %p389 = pneg %p222
        %p390 = pneg %p219
        %p391 = pneg %p248
        %p392 = pneg %p245
        %s393 = sand.u32 %s235, 1
        %s394 = scalar_lea.sflag [#allocation5], %s393
        %s395 = sand.u32 %s235, 1
        %s396 = smul.addr %s395, 32
        %s397 = scalar_lea.vmem [#allocation8], %s396
        %p398 = pneg %p274
        %p399 = pneg %p271
        %s400 = sand.u32 %s261, 1
        %s401 = scalar_lea.sflag [#allocation10], %s400
        %s402 = sand.u32 %s261, 1
        %s403 = smul.addr %s402, 4
        %s404 = scalar_lea.vmem [#allocation9], %s403
        %s405 = smul.u32 4, %s33
        %s406 = smul.u32 4, %s33
        %s407 = smul.u32 4, %s33
        %v408 = vld [vmem:[#allocation6] sm:$0xff]
        %v409 = vld [vmem:[#allocation6 + $0x8] sm:$0xff]
        %v410 = vld [vmem:[%s2] sm:$0xff]
        %v411 = vld [vmem:[%s2 + $0x8] sm:$0xff]
        %v412 = vld [vmem:[%s2 + $0x10] sm:$0xff]
        %v413 = vld [vmem:[%s2 + $0x18] sm:$0xff]
        %v414 = vld [vmem:[%s3] sm:$0xff]
        %v415 = vld [vmem:[%s3 + $0x8] sm:$0xff]
        %v416 = vld [vmem:[%s3 + $0x10] sm:$0xff]
        %v417 = vld [vmem:[%s3 + $0x18] sm:$0xff]
        %v418 = vld [vmem:[%s4] sm:$0xff]
        %v419 = vld [vmem:[%s4 + $0x8] sm:$0xff]
        %v420 = vld [vmem:[%s4 + $0x10] sm:$0xff]
        %v421 = vld [vmem:[%s4 + $0x18] sm:$0xff]
        %v422 = vld [vmem:[%s5] sm:$0x1]
        %v423 = vld [vmem:[%s5 + $0x1] sm:$0x1]
        %v424 = vld [vmem:[%s5 + $0x2] sm:$0x1]
        %v425 = vld [vmem:[%s6] sm:$0x1]
        %v426 = vld [vmem:[%s7] sm:$0xff]
        %s427 = sld [smem:[#allocation2]]
        %v428 = vld [vmem:[%s359] sm:$0xff]
        %v429 = vld [vmem:[%s359 + $0x8] sm:$0xff]
        %v430 = vld [vmem:[%s359 + $0x10] sm:$0xff]
        %v431 = vld [vmem:[%s359 + $0x18] sm:$0xff]
        %v432 = vlaneseq
        %v433 = vshrl.u32 %v432, 7
        %v434 = vsub.s32 0, %v433
        %v435 = vrot.slane %v422, %v434
        %vm436 = vcmask 130048
        %v438 = vsel %vm436, %v428, 0
        %v441 = vsel %vm436, %v429, 0
        %v444 = vsel %vm436, %v430, 0
        %v447 = vsel %vm436, %v431, 0
        %449 = vmatprep.subr.mxu0 0.0
        %450 = vmatpush1.msra.mxu0 %v408
        %451 = vmatprep.subr.mxu0 0.0
        %452 = vmatpush1.msra.mxu0 %v409
        %453 = vmatprep.subr.mxu0 0.0
        %454 = vmatpush1.msra.mxu0 0.0
        %455 = vmatprep.subr.mxu0 0.0
        %456 = vmatpush1.msra.mxu0 0.0
        %457 = vmatprep.subr.mxu0 0.0
        %458 = vmatpush1.msra.mxu0 0.0
        %459 = vmatprep.subr.mxu0 0.0
        %460 = vmatpush1.msra.mxu0 0.0
        %461 = vmatprep.subr.mxu0 0.0
        %462 = vmatpush1.msra.mxu0 0.0
        %463 = vmatprep.subr.mxu0 0.0
        %464 = vmatpush1.msra.mxu0 0.0
        %465 = vmatprep.subr.mxu0 0.0
        %466 = vmatpush1.msra.mxu0 0.0
        %467 = vmatprep.subr.mxu0 0.0
        %468 = vmatpush1.msra.mxu0 0.0
        %469 = vmatprep.subr.mxu0 0.0
        %470 = vmatpush1.msra.mxu0 0.0
        %471 = vmatprep.subr.mxu0 0.0
        %472 = vmatpush1.msra.mxu0 0.0
        %473 = vmatprep.subr.mxu0 0.0
        %474 = vmatpush1.msra.mxu0 0.0
        %475 = vmatprep.subr.mxu0 0.0
        %476 = vmatpush1.msra.mxu0 0.0
        %477 = vmatprep.subr.mxu0 0.0
        %478 = vmatpush1.msra.mxu0 0.0
        %479 = vmatprep.subr.mxu0 0.0
        %480 = vmatpush1.msra.mxu0 0.0
        %481 = vmatprep.subr.mxu0 0.0
        %482 = vmatpush1.msra.mxu0 0.0
        %483 = vmatprep.subr.mxu0 0.0
        %484 = vmatpush1.msra.mxu0 0.0
        %485 = vmatprep.subr.mxu0 0.0
        %486 = vmatpush1.msra.mxu0 0.0
        %487 = vmatprep.subr.mxu0 0.0
        %488 = vmatpush1.msra.mxu0 0.0
        %489 = vmatprep.subr.mxu0 0.0
        %490 = vmatpush1.msra.mxu0 0.0
        %491 = vmatprep.subr.mxu0 0.0
        %492 = vmatpush1.msra.mxu0 0.0
        %493 = vmatprep.subr.mxu0 0.0
        %494 = vmatpush1.msra.mxu0 0.0
        %495 = vmatprep.subr.mxu0 0.0
        %496 = vmatpush1.msra.mxu0 0.0
        %497 = vmatprep.subr.mxu0 0.0
        %498 = vmatpush1.msra.mxu0 0.0
        %499 = vmatprep.subr.mxu0 0.0
        %500 = vmatpush1.msra.mxu0 0.0
        %501 = vmatprep.subr.mxu0 0.0
        %502 = vmatpush1.msra.mxu0 0.0
        %503 = vmatprep.subr.mxu0 0.0
        %504 = vmatpush1.msra.mxu0 0.0
        %505 = vmatprep.subr.mxu0 0.0
        %506 = vmatpush1.msra.mxu0 0.0
        %507 = vmatprep.subr.mxu0 0.0
        %508 = vmatpush1.msra.mxu0 0.0
        %509 = vmatprep.subr.mxu0 0.0
        %510 = vmatpush1.msra.mxu0 0.0
        %511 = vmatprep.subr.mxu0 0.0
        %512 = vmatpush1.msra.mxu0 0.0
        %513 = vmatprep.mubr.f32.mxu0 0.0
        %514 = vmatmul.mubr.f32.gmra.mrb[0].mxu0 %v438
        %v515 = vpop.f32.mrb[0].mxu0
        %v516 = vadd.f32 %v435, %v515
        %v517 = vpop.f32.mrb[0].mxu0
        %518 = vmatprep.mubr.f32.mxu0 0.0
        %519 = vmatmul.mubr.f32.gmra.mrb[0].mxu0 %v441
        %v520 = vpop.f32.mrb[0].mxu0
        %v521 = vadd.f32 %v435, %v520
        %v522 = vpop.f32.mrb[0].mxu0
        %523 = vmatprep.mubr.f32.mxu0 0.0
        %524 = vmatmul.mubr.f32.gmra.mrb[0].mxu0 %v444
        %v525 = vpop.f32.mrb[0].mxu0
        %v526 = vadd.f32 %v435, %v525
        %v527 = vpop.f32.mrb[0].mxu0
        %528 = vmatprep.mubr.f32.mxu0 0.0
        %529 = vmatmul.mubr.f32.gmra.mrb[0].mxu0 %v447
        %v530 = vpop.f32.mrb[0].mxu0
        %v531 = vadd.f32 %v435, %v530
        %v532 = vpop.f32.mrb[0].mxu0
        %533 = vdwg.mxu0
        %vm534 = vcmask 261120
        %v536 = vsel %vm534, %v516, 0
        %v539 = vsel %vm534, %v521, 0
        %v542 = vsel %vm534, %v526, 0
        %v545 = vsel %vm534, %v531, 0
        %547 = vmatprep.subr.mxu0 0.0
        %548 = vmatpush1.msra.mxu0 %v410
        %549 = vmatprep.subr.mxu0 0.0
        %550 = vmatpush1.msra.mxu0 %v411
        %551 = vmatprep.subr.mxu0 0.0
        %552 = vmatpush1.msra.mxu0 %v412
        %553 = vmatprep.subr.mxu0 0.0
        %554 = vmatpush1.msra.mxu0 %v413
        %555 = vmatprep.subr.mxu0 0.0
        %556 = vmatpush1.msra.mxu0 0.0
        %557 = vmatprep.subr.mxu0 0.0
        %558 = vmatpush1.msra.mxu0 0.0
        %559 = vmatprep.subr.mxu0 0.0
        %560 = vmatpush1.msra.mxu0 0.0
        %561 = vmatprep.subr.mxu0 0.0
        %562 = vmatpush1.msra.mxu0 0.0
        %563 = vmatprep.subr.mxu0 0.0
        %564 = vmatpush1.msra.mxu0 0.0
        %565 = vmatprep.subr.mxu0 0.0
        %566 = vmatpush1.msra.mxu0 0.0
        %567 = vmatprep.subr.mxu0 0.0
        %568 = vmatpush1.msra.mxu0 0.0
        %569 = vmatprep.subr.mxu0 0.0
        %570 = vmatpush1.msra.mxu0 0.0
        %571 = vmatprep.subr.mxu0 0.0
        %572 = vmatpush1.msra.mxu0 0.0
        %573 = vmatprep.subr.mxu0 0.0
        %574 = vmatpush1.msra.mxu0 0.0
        %575 = vmatprep.subr.mxu0 0.0
        %576 = vmatpush1.msra.mxu0 0.0
        %577 = vmatprep.subr.mxu0 0.0
        %578 = vmatpush1.msra.mxu0 0.0
        %579 = vmatprep.subr.mxu0 0.0
        %580 = vmatpush1.msra.mxu0 0.0
        %581 = vmatprep.subr.mxu0 0.0
        %582 = vmatpush1.msra.mxu0 0.0
        %583 = vmatprep.subr.mxu0 0.0
        %584 = vmatpush1.msra.mxu0 0.0
        %585 = vmatprep.subr.mxu0 0.0
        %586 = vmatpush1.msra.mxu0 0.0
        %587 = vmatprep.subr.mxu0 0.0
        %588 = vmatpush1.msra.mxu0 0.0
        %589 = vmatprep.subr.mxu0 0.0
        %590 = vmatpush1.msra.mxu0 0.0
        %591 = vmatprep.subr.mxu0 0.0
        %592 = vmatpush1.msra.mxu0 0.0
        %593 = vmatprep.subr.mxu0 0.0
        %594 = vmatpush1.msra.mxu0 0.0
        %595 = vmatprep.subr.mxu0 0.0
        %596 = vmatpush1.msra.mxu0 0.0
        %597 = vmatprep.subr.mxu0 0.0
        %598 = vmatpush1.msra.mxu0 0.0
        %599 = vmatprep.subr.mxu0 0.0
        %600 = vmatpush1.msra.mxu0 0.0
        %601 = vmatprep.subr.mxu0 0.0
        %602 = vmatpush1.msra.mxu0 0.0
        %603 = vmatprep.subr.mxu0 0.0
        %604 = vmatpush1.msra.mxu0 0.0
        %605 = vmatprep.subr.mxu0 0.0
        %606 = vmatpush1.msra.mxu0 0.0
        %607 = vmatprep.subr.mxu0 0.0
        %608 = vmatpush1.msra.mxu0 0.0
        %609 = vmatprep.subr.mxu0 0.0
        %610 = vmatpush1.msra.mxu0 0.0
        %611 = vmatprep.mubr.f32.mxu0 0.0
        %612 = vmatmul.mubr.f32.gmra.mrb[0].mxu0 %v536
        %v613 = vpop.f32.mrb[0].mxu0
        %v614 = vadd.f32 0.0, %v613
        %v615 = vpop.f32.mrb[0].mxu0
        %616 = vmatprep.mubr.f32.mxu0 0.0
        %617 = vmatmul.mubr.f32.gmra.mrb[0].mxu0 %v539
        %v618 = vpop.f32.mrb[0].mxu0
        %v619 = vadd.f32 0.0, %v618
        %v620 = vpop.f32.mrb[0].mxu0
        %621 = vmatprep.mubr.f32.mxu0 0.0
        %622 = vmatmul.mubr.f32.gmra.mrb[0].mxu0 %v542
        %v623 = vpop.f32.mrb[0].mxu0
        %v624 = vadd.f32 0.0, %v623
        %v625 = vpop.f32.mrb[0].mxu0
        %626 = vmatprep.mubr.f32.mxu0 0.0
        %627 = vmatmul.mubr.f32.gmra.mrb[0].mxu0 %v545
        %v628 = vpop.f32.mrb[0].mxu0
        %v629 = vadd.f32 0.0, %v628
        %v630 = vpop.f32.mrb[0].mxu0
        %631 = vdwg.mxu0
        %632 = vmatprep.subr.mxu0 0.0
        %633 = vmatpush1.msra.mxu0 %v414
        %634 = vmatprep.subr.mxu0 0.0
        %635 = vmatpush1.msra.mxu0 %v415
        %636 = vmatprep.subr.mxu0 0.0
        %637 = vmatpush1.msra.mxu0 %v416
        %638 = vmatprep.subr.mxu0 0.0
        %639 = vmatpush1.msra.mxu0 %v417
        %640 = vmatprep.subr.mxu0 0.0
        %641 = vmatpush1.msra.mxu0 0.0
        %642 = vmatprep.subr.mxu0 0.0
        %643 = vmatpush1.msra.mxu0 0.0
        %644 = vmatprep.subr.mxu0 0.0
        %645 = vmatpush1.msra.mxu0 0.0
        %646 = vmatprep.subr.mxu0 0.0
        %647 = vmatpush1.msra.mxu0 0.0
        %648 = vmatprep.subr.mxu0 0.0
        %649 = vmatpush1.msra.mxu0 0.0
        %650 = vmatprep.subr.mxu0 0.0
        %651 = vmatpush1.msra.mxu0 0.0
        %652 = vmatprep.subr.mxu0 0.0
        %653 = vmatpush1.msra.mxu0 0.0
        %654 = vmatprep.subr.mxu0 0.0
        %655 = vmatpush1.msra.mxu0 0.0
        %656 = vmatprep.subr.mxu0 0.0
        %657 = vmatpush1.msra.mxu0 0.0
        %658 = vmatprep.subr.mxu0 0.0
        %659 = vmatpush1.msra.mxu0 0.0
        %660 = vmatprep.subr.mxu0 0.0
        %661 = vmatpush1.msra.mxu0 0.0
        %662 = vmatprep.subr.mxu0 0.0
        %663 = vmatpush1.msra.mxu0 0.0
        %664 = vmatprep.subr.mxu0 0.0
        %665 = vmatpush1.msra.mxu0 0.0
        %666 = vmatprep.subr.mxu0 0.0
        %667 = vmatpush1.msra.mxu0 0.0
        %668 = vmatprep.subr.mxu0 0.0
        %669 = vmatpush1.msra.mxu0 0.0
        %670 = vmatprep.subr.mxu0 0.0
        %671 = vmatpush1.msra.mxu0 0.0
        %672 = vmatprep.subr.mxu0 0.0
        %673 = vmatpush1.msra.mxu0 0.0
        %674 = vmatprep.subr.mxu0 0.0
        %675 = vmatpush1.msra.mxu0 0.0
        %676 = vmatprep.subr.mxu0 0.0
        %677 = vmatpush1.msra.mxu0 0.0
        %678 = vmatprep.subr.mxu0 0.0
        %679 = vmatpush1.msra.mxu0 0.0
        %680 = vmatprep.subr.mxu0 0.0
        %681 = vmatpush1.msra.mxu0 0.0
        %682 = vmatprep.subr.mxu0 0.0
        %683 = vmatpush1.msra.mxu0 0.0
        %684 = vmatprep.subr.mxu0 0.0
        %685 = vmatpush1.msra.mxu0 0.0
        %686 = vmatprep.subr.mxu0 0.0
        %687 = vmatpush1.msra.mxu0 0.0
        %688 = vmatprep.subr.mxu0 0.0
        %689 = vmatpush1.msra.mxu0 0.0
        %690 = vmatprep.subr.mxu0 0.0
        %691 = vmatpush1.msra.mxu0 0.0
        %692 = vmatprep.subr.mxu0 0.0
        %693 = vmatpush1.msra.mxu0 0.0
        %694 = vmatprep.subr.mxu0 0.0
        %695 = vmatpush1.msra.mxu0 0.0
        %696 = vmatprep.mubr.f32.mxu0 0.0
        %697 = vmatmul.mubr.f32.gmra.mrb[0].mxu0 %v536
        %v698 = vpop.f32.mrb[0].mxu0
        %v699 = vadd.f32 0.0, %v698
        %v700 = vpop.f32.mrb[0].mxu0
        %701 = vmatprep.mubr.f32.mxu0 0.0
        %702 = vmatmul.mubr.f32.gmra.mrb[0].mxu0 %v539
        %v703 = vpop.f32.mrb[0].mxu0
        %v704 = vadd.f32 0.0, %v703
        %v705 = vpop.f32.mrb[0].mxu0
        %706 = vmatprep.mubr.f32.mxu0 0.0
        %707 = vmatmul.mubr.f32.gmra.mrb[0].mxu0 %v542
        %v708 = vpop.f32.mrb[0].mxu0
        %v709 = vadd.f32 0.0, %v708
        %v710 = vpop.f32.mrb[0].mxu0
        %711 = vmatprep.mubr.f32.mxu0 0.0
        %712 = vmatmul.mubr.f32.gmra.mrb[0].mxu0 %v545
        %v713 = vpop.f32.mrb[0].mxu0
        %v714 = vadd.f32 0.0, %v713
        %v715 = vpop.f32.mrb[0].mxu0
        %716 = vdwg.mxu0
        %v721 = vcombine.high %v614, %v614
        %v723 = vunpack.c.l.s4 1966171168
        %v724 = vunpack.c.0.s8 %v723
        %v725 = vlaneseq
        %v726 = vshrl.u32 %v725, 7
        %v727 = vsub.s32 %v724, %v726
        %v728 = vrot.slane %v614, %v727
        %v730 = vunpack.c.l.s4 1966171168
        %v731 = vunpack.c.0.s8 %v730
        %v732 = vlaneseq
        %v733 = vshrl.u32 %v732, 7
        %v734 = vsub.s32 %v731, %v733
        %v735 = vrot.slane %v721, %v734
        %v736 = vcombine.high %v728, %v728
        %v737 = vcombine.high %v735, %v735
        %v739 = vunpack.c.l.s4 1966171168
        %v740 = vunpack.c.0.s8 %v739
        %v741 = vlaneseq
        %v742 = vshrl.u32 %v741, 7
        %v743 = vsub.s32 %v740, %v742
        %v744 = vrot.slane %v728, %v743
        %v746 = vunpack.c.l.s4 1966171168
        %v747 = vunpack.c.0.s8 %v746
        %v748 = vlaneseq
        %v749 = vshrl.u32 %v748, 7
        %v750 = vsub.s32 %v747, %v749
        %v751 = vrot.slane %v735, %v750
        %v753 = vunpack.c.l.s4 1966171168
        %v754 = vunpack.c.0.s8 %v753
        %v755 = vlaneseq
        %v756 = vshrl.u32 %v755, 7
        %v757 = vsub.s32 %v754, %v756
        %v758 = vrot.slane %v736, %v757
        %v760 = vunpack.c.l.s4 1966171168
        %v761 = vunpack.c.0.s8 %v760
        %v762 = vlaneseq
        %v763 = vshrl.u32 %v762, 7
        %v764 = vsub.s32 %v761, %v763
        %v765 = vrot.slane %v737, %v764
        %v766 = vcombine.high %v744, %v744
        %v767 = vcombine.high %v751, %v751
        %v768 = vcombine.high %v758, %v758
        %v769 = vcombine.high %v765, %v765
        %v770 = vcombine.high %v619, %v619
        %v772 = vunpack.c.l.s4 1966171168
        %v773 = vunpack.c.0.s8 %v772
        %v774 = vlaneseq
        %v775 = vshrl.u32 %v774, 7
        %v776 = vsub.s32 %v773, %v775
        %v777 = vrot.slane %v619, %v776
        %v779 = vunpack.c.l.s4 1966171168
        %v780 = vunpack.c.0.s8 %v779
        %v781 = vlaneseq
        %v782 = vshrl.u32 %v781, 7
        %v783 = vsub.s32 %v780, %v782
        %v784 = vrot.slane %v770, %v783
        %v785 = vcombine.high %v777, %v777
        %v786 = vcombine.high %v784, %v784
        %v788 = vunpack.c.l.s4 1966171168
        %v789 = vunpack.c.0.s8 %v788
        %v790 = vlaneseq
        %v791 = vshrl.u32 %v790, 7
        %v792 = vsub.s32 %v789, %v791
        %v793 = vrot.slane %v777, %v792
        %v795 = vunpack.c.l.s4 1966171168
        %v796 = vunpack.c.0.s8 %v795
        %v797 = vlaneseq
        %v798 = vshrl.u32 %v797, 7
        %v799 = vsub.s32 %v796, %v798
        %v800 = vrot.slane %v784, %v799
        %v802 = vunpack.c.l.s4 1966171168
        %v803 = vunpack.c.0.s8 %v802
        %v804 = vlaneseq
        %v805 = vshrl.u32 %v804, 7
        %v806 = vsub.s32 %v803, %v805
        %v807 = vrot.slane %v785, %v806
        %v809 = vunpack.c.l.s4 1966171168
        %v810 = vunpack.c.0.s8 %v809
        %v811 = vlaneseq
        %v812 = vshrl.u32 %v811, 7
        %v813 = vsub.s32 %v810, %v812
        %v814 = vrot.slane %v786, %v813
        %v815 = vcombine.high %v793, %v793
        %v816 = vcombine.high %v800, %v800
        %v817 = vcombine.high %v807, %v807
        %v818 = vcombine.high %v814, %v814
        %v819 = vcombine.high %v624, %v624
        %v821 = vunpack.c.l.s4 1966171168
        %v822 = vunpack.c.0.s8 %v821
        %v823 = vlaneseq
        %v824 = vshrl.u32 %v823, 7
        %v825 = vsub.s32 %v822, %v824
        %v826 = vrot.slane %v624, %v825
        %v828 = vunpack.c.l.s4 1966171168
        %v829 = vunpack.c.0.s8 %v828
        %v830 = vlaneseq
        %v831 = vshrl.u32 %v830, 7
        %v832 = vsub.s32 %v829, %v831
        %v833 = vrot.slane %v819, %v832
        %v834 = vcombine.high %v826, %v826
        %v835 = vcombine.high %v833, %v833
        %v837 = vunpack.c.l.s4 1966171168
        %v838 = vunpack.c.0.s8 %v837
        %v839 = vlaneseq
        %v840 = vshrl.u32 %v839, 7
        %v841 = vsub.s32 %v838, %v840
        %v842 = vrot.slane %v826, %v841
        %v844 = vunpack.c.l.s4 1966171168
        %v845 = vunpack.c.0.s8 %v844
        %v846 = vlaneseq
        %v847 = vshrl.u32 %v846, 7
        %v848 = vsub.s32 %v845, %v847
        %v849 = vrot.slane %v833, %v848
        %v851 = vunpack.c.l.s4 1966171168
        %v852 = vunpack.c.0.s8 %v851
        %v853 = vlaneseq
        %v854 = vshrl.u32 %v853, 7
        %v855 = vsub.s32 %v852, %v854
        %v856 = vrot.slane %v834, %v855
        %v858 = vunpack.c.l.s4 1966171168
        %v859 = vunpack.c.0.s8 %v858
        %v860 = vlaneseq
        %v861 = vshrl.u32 %v860, 7
        %v862 = vsub.s32 %v859, %v861
        %v863 = vrot.slane %v835, %v862
        %v864 = vcombine.high %v842, %v842
        %v865 = vcombine.high %v849, %v849
        %v866 = vcombine.high %v856, %v856
        %v867 = vcombine.high %v863, %v863
        %v868 = vcombine.high %v629, %v629
        %v870 = vunpack.c.l.s4 1966171168
        %v871 = vunpack.c.0.s8 %v870
        %v872 = vlaneseq
        %v873 = vshrl.u32 %v872, 7
        %v874 = vsub.s32 %v871, %v873
        %v875 = vrot.slane %v629, %v874
        %v877 = vunpack.c.l.s4 1966171168
        %v878 = vunpack.c.0.s8 %v877
        %v879 = vlaneseq
        %v880 = vshrl.u32 %v879, 7
        %v881 = vsub.s32 %v878, %v880
        %v882 = vrot.slane %v868, %v881
        %v883 = vcombine.high %v875, %v875
        %v884 = vcombine.high %v882, %v882
        %v886 = vunpack.c.l.s4 1966171168
        %v887 = vunpack.c.0.s8 %v886
        %v888 = vlaneseq
        %v889 = vshrl.u32 %v888, 7
        %v890 = vsub.s32 %v887, %v889
        %v891 = vrot.slane %v875, %v890
        %v893 = vunpack.c.l.s4 1966171168
        %v894 = vunpack.c.0.s8 %v893
        %v895 = vlaneseq
        %v896 = vshrl.u32 %v895, 7
        %v897 = vsub.s32 %v894, %v896
        %v898 = vrot.slane %v882, %v897
        %v900 = vunpack.c.l.s4 1966171168
        %v901 = vunpack.c.0.s8 %v900
        %v902 = vlaneseq
        %v903 = vshrl.u32 %v902, 7
        %v904 = vsub.s32 %v901, %v903
        %v905 = vrot.slane %v883, %v904
        %v907 = vunpack.c.l.s4 1966171168
        %v908 = vunpack.c.0.s8 %v907
        %v909 = vlaneseq
        %v910 = vshrl.u32 %v909, 7
        %v911 = vsub.s32 %v908, %v910
        %v912 = vrot.slane %v884, %v911
        %v913 = vcombine.high %v891, %v891
        %v914 = vcombine.high %v898, %v898
        %v915 = vcombine.high %v905, %v905
        %v916 = vcombine.high %v912, %v912
        %v917 = vlaneseq
        %v918 = vshrl.u32 %v917, 7
        %v919 = vsub.s32 0, %v918
        %v920 = vrot.slane %v744, %v919
        %v921 = vlaneseq
        %v922 = vshrl.u32 %v921, 7
        %v923 = vsub.s32 0, %v922
        %v924 = vrot.slane %v758, %v923
        %v925 = vlaneseq
        %v926 = vshrl.u32 %v925, 7
        %v927 = vsub.s32 0, %v926
        %v928 = vrot.slane %v766, %v927
        %v929 = vlaneseq
        %v930 = vshrl.u32 %v929, 7
        %v931 = vsub.s32 0, %v930
        %v932 = vrot.slane %v768, %v931
        %v933 = vlaneseq
        %v934 = vshrl.u32 %v933, 7
        %v935 = vsub.s32 0, %v934
        %v936 = vrot.slane %v751, %v935
        %v937 = vlaneseq
        %v938 = vshrl.u32 %v937, 7
        %v939 = vsub.s32 0, %v938
        %v940 = vrot.slane %v765, %v939
        %v941 = vlaneseq
        %v942 = vshrl.u32 %v941, 7
        %v943 = vsub.s32 0, %v942
        %v944 = vrot.slane %v767, %v943
        %v945 = vlaneseq
        %v946 = vshrl.u32 %v945, 7
        %v947 = vsub.s32 0, %v946
        %v948 = vrot.slane %v769, %v947
        %v949 = vlaneseq
        %v950 = vshrl.u32 %v949, 7
        %v951 = vsub.s32 0, %v950
        %v952 = vrot.slane %v793, %v951
        %v953 = vlaneseq
        %v954 = vshrl.u32 %v953, 7
        %v955 = vsub.s32 0, %v954
        %v956 = vrot.slane %v807, %v955
        %v957 = vlaneseq
        %v958 = vshrl.u32 %v957, 7
        %v959 = vsub.s32 0, %v958
        %v960 = vrot.slane %v815, %v959
        %v961 = vlaneseq
        %v962 = vshrl.u32 %v961, 7
        %v963 = vsub.s32 0, %v962
        %v964 = vrot.slane %v817, %v963
        %v965 = vlaneseq
        %v966 = vshrl.u32 %v965, 7
        %v967 = vsub.s32 0, %v966
        %v968 = vrot.slane %v800, %v967
        %v969 = vlaneseq
        %v970 = vshrl.u32 %v969, 7
        %v971 = vsub.s32 0, %v970
        %v972 = vrot.slane %v814, %v971
        %v973 = vlaneseq
        %v974 = vshrl.u32 %v973, 7
        %v975 = vsub.s32 0, %v974
        %v976 = vrot.slane %v816, %v975
        %v977 = vlaneseq
        %v978 = vshrl.u32 %v977, 7
        %v979 = vsub.s32 0, %v978
        %v980 = vrot.slane %v818, %v979
        %v981 = vlaneseq
        %v982 = vshrl.u32 %v981, 7
        %v983 = vsub.s32 0, %v982
        %v984 = vrot.slane %v842, %v983
        %v985 = vlaneseq
        %v986 = vshrl.u32 %v985, 7
        %v987 = vsub.s32 0, %v986
        %v988 = vrot.slane %v856, %v987
        %v989 = vlaneseq
        %v990 = vshrl.u32 %v989, 7
        %v991 = vsub.s32 0, %v990
        %v992 = vrot.slane %v864, %v991
        %v993 = vlaneseq
        %v994 = vshrl.u32 %v993, 7
        %v995 = vsub.s32 0, %v994
        %v996 = vrot.slane %v866, %v995
        %v997 = vlaneseq
        %v998 = vshrl.u32 %v997, 7
        %v999 = vsub.s32 0, %v998
        %v1000 = vrot.slane %v849, %v999
        %v1001 = vlaneseq
        %v1002 = vshrl.u32 %v1001, 7
        %v1003 = vsub.s32 0, %v1002
        %v1004 = vrot.slane %v863, %v1003
        %v1005 = vlaneseq
        %v1006 = vshrl.u32 %v1005, 7
        %v1007 = vsub.s32 0, %v1006
        %v1008 = vrot.slane %v865, %v1007
        %v1009 = vlaneseq
        %v1010 = vshrl.u32 %v1009, 7
        %v1011 = vsub.s32 0, %v1010
        %v1012 = vrot.slane %v867, %v1011
        %v1013 = vlaneseq
        %v1014 = vshrl.u32 %v1013, 7
        %v1015 = vsub.s32 0, %v1014
        %v1016 = vrot.slane %v891, %v1015
        %v1017 = vlaneseq
        %v1018 = vshrl.u32 %v1017, 7
        %v1019 = vsub.s32 0, %v1018
        %v1020 = vrot.slane %v905, %v1019
        %v1021 = vlaneseq
        %v1022 = vshrl.u32 %v1021, 7
        %v1023 = vsub.s32 0, %v1022
        %v1024 = vrot.slane %v913, %v1023
        %v1025 = vlaneseq
        %v1026 = vshrl.u32 %v1025, 7
        %v1027 = vsub.s32 0, %v1026
        %v1028 = vrot.slane %v915, %v1027
        %v1029 = vlaneseq
        %v1030 = vshrl.u32 %v1029, 7
        %v1031 = vsub.s32 0, %v1030
        %v1032 = vrot.slane %v898, %v1031
        %v1033 = vlaneseq
        %v1034 = vshrl.u32 %v1033, 7
        %v1035 = vsub.s32 0, %v1034
        %v1036 = vrot.slane %v912, %v1035
        %v1037 = vlaneseq
        %v1038 = vshrl.u32 %v1037, 7
        %v1039 = vsub.s32 0, %v1038
        %v1040 = vrot.slane %v914, %v1039
        %v1041 = vlaneseq
        %v1042 = vshrl.u32 %v1041, 7
        %v1043 = vsub.s32 0, %v1042
        %v1044 = vrot.slane %v916, %v1043
        %v1077 = vadd.f32 %v920, %v699
        %v1078 = vadd.f32 %v924, %v699
        %v1079 = vadd.f32 %v928, %v699
        %v1080 = vadd.f32 %v932, %v699
        %v1081 = vadd.f32 %v936, %v699
        %v1082 = vadd.f32 %v940, %v699
        %v1083 = vadd.f32 %v944, %v699
        %v1084 = vadd.f32 %v948, %v699
        %v1085 = vadd.f32 %v952, %v704
        %v1086 = vadd.f32 %v956, %v704
        %v1087 = vadd.f32 %v960, %v704
        %v1088 = vadd.f32 %v964, %v704
        %v1089 = vadd.f32 %v968, %v704
        %v1090 = vadd.f32 %v972, %v704
        %v1091 = vadd.f32 %v976, %v704
        %v1092 = vadd.f32 %v980, %v704
        %v1093 = vadd.f32 %v984, %v709
        %v1094 = vadd.f32 %v988, %v709
        %v1095 = vadd.f32 %v992, %v709
        %v1096 = vadd.f32 %v996, %v709
        %v1097 = vadd.f32 %v1000, %v709
        %v1098 = vadd.f32 %v1004, %v709
        %v1099 = vadd.f32 %v1008, %v709
        %v1100 = vadd.f32 %v1012, %v709
        %v1101 = vadd.f32 %v1016, %v714
        %v1102 = vadd.f32 %v1020, %v714
        %v1103 = vadd.f32 %v1024, %v714
        %v1104 = vadd.f32 %v1028, %v714
        %v1105 = vadd.f32 %v1032, %v714
        %v1106 = vadd.f32 %v1036, %v714
        %v1107 = vadd.f32 %v1040, %v714
        %v1108 = vadd.f32 %v1044, %v714
        %v1109 = vlaneseq
        %v1110 = vshrl.u32 %v1109, 7
        %v1111 = vsub.s32 0, %v1110
        %v1112 = vrot.slane %v423, %v1111
        %v1113 = vadd.f32 %v1077, %v1112
        %v1114 = vadd.f32 %v1078, %v1112
        %v1115 = vadd.f32 %v1079, %v1112
        %v1116 = vadd.f32 %v1080, %v1112
        %v1117 = vadd.f32 %v1081, %v1112
        %v1118 = vadd.f32 %v1082, %v1112
        %v1119 = vadd.f32 %v1083, %v1112
        %v1120 = vadd.f32 %v1084, %v1112
        %v1121 = vadd.f32 %v1085, %v1112
        %v1122 = vadd.f32 %v1086, %v1112
        %v1123 = vadd.f32 %v1087, %v1112
        %v1124 = vadd.f32 %v1088, %v1112
        %v1125 = vadd.f32 %v1089, %v1112
        %v1126 = vadd.f32 %v1090, %v1112
        %v1127 = vadd.f32 %v1091, %v1112
        %v1128 = vadd.f32 %v1092, %v1112
        %v1129 = vadd.f32 %v1093, %v1112
        %v1130 = vadd.f32 %v1094, %v1112
        %v1131 = vadd.f32 %v1095, %v1112
        %v1132 = vadd.f32 %v1096, %v1112
        %v1133 = vadd.f32 %v1097, %v1112
        %v1134 = vadd.f32 %v1098, %v1112
        %v1135 = vadd.f32 %v1099, %v1112
        %v1136 = vadd.f32 %v1100, %v1112
        %v1137 = vadd.f32 %v1101, %v1112
        %v1138 = vadd.f32 %v1102, %v1112
        %v1139 = vadd.f32 %v1103, %v1112
        %v1140 = vadd.f32 %v1104, %v1112
        %v1141 = vadd.f32 %v1105, %v1112
        %v1142 = vadd.f32 %v1106, %v1112
        %v1143 = vadd.f32 %v1107, %v1112
        %v1144 = vadd.f32 %v1108, %v1112
        %v1145 = vmax.f32 %v1113, 0.0
        %v1146 = vmax.f32 %v1114, 0.0
        %v1147 = vmax.f32 %v1115, 0.0
        %v1148 = vmax.f32 %v1116, 0.0
        %v1149 = vmax.f32 %v1117, 0.0
        %v1150 = vmax.f32 %v1118, 0.0
        %v1151 = vmax.f32 %v1119, 0.0
        %v1152 = vmax.f32 %v1120, 0.0
        %v1153 = vmax.f32 %v1121, 0.0
        %v1154 = vmax.f32 %v1122, 0.0
        %v1155 = vmax.f32 %v1123, 0.0
        %v1156 = vmax.f32 %v1124, 0.0
        %v1157 = vmax.f32 %v1125, 0.0
        %v1158 = vmax.f32 %v1126, 0.0
        %v1159 = vmax.f32 %v1127, 0.0
        %v1160 = vmax.f32 %v1128, 0.0
        %v1161 = vmax.f32 %v1129, 0.0
        %v1162 = vmax.f32 %v1130, 0.0
        %v1163 = vmax.f32 %v1131, 0.0
        %v1164 = vmax.f32 %v1132, 0.0
        %v1165 = vmax.f32 %v1133, 0.0
        %v1166 = vmax.f32 %v1134, 0.0
        %v1167 = vmax.f32 %v1135, 0.0
        %v1168 = vmax.f32 %v1136, 0.0
        %v1169 = vmax.f32 %v1137, 0.0
        %v1170 = vmax.f32 %v1138, 0.0
        %v1171 = vmax.f32 %v1139, 0.0
        %v1172 = vmax.f32 %v1140, 0.0
        %v1173 = vmax.f32 %v1141, 0.0
        %v1174 = vmax.f32 %v1142, 0.0
        %v1175 = vmax.f32 %v1143, 0.0
        %v1176 = vmax.f32 %v1144, 0.0
        %v1177 = vlaneseq
        %v1178 = vshrl.u32 %v1177, 7
        %v1179 = vsub.s32 0, %v1178
        %v1180 = vrot.slane %v424, %v1179
        %v1181 = vmul.f32 %v1145, %v1180
        %v1182 = vmul.f32 %v1146, %v1180
        %v1183 = vmul.f32 %v1147, %v1180
        %v1184 = vmul.f32 %v1148, %v1180
        %v1185 = vmul.f32 %v1149, %v1180
        %v1186 = vmul.f32 %v1150, %v1180
        %v1187 = vmul.f32 %v1151, %v1180
        %v1188 = vmul.f32 %v1152, %v1180
        %v1189 = vmul.f32 %v1153, %v1180
        %v1190 = vmul.f32 %v1154, %v1180
        %v1191 = vmul.f32 %v1155, %v1180
        %v1192 = vmul.f32 %v1156, %v1180
        %v1193 = vmul.f32 %v1157, %v1180
        %v1194 = vmul.f32 %v1158, %v1180
        %v1195 = vmul.f32 %v1159, %v1180
        %v1196 = vmul.f32 %v1160, %v1180
        %v1197 = vmul.f32 %v1161, %v1180
        %v1198 = vmul.f32 %v1162, %v1180
        %v1199 = vmul.f32 %v1163, %v1180
        %v1200 = vmul.f32 %v1164, %v1180
        %v1201 = vmul.f32 %v1165, %v1180
        %v1202 = vmul.f32 %v1166, %v1180
        %v1203 = vmul.f32 %v1167, %v1180
        %v1204 = vmul.f32 %v1168, %v1180
        %v1205 = vmul.f32 %v1169, %v1180
        %v1206 = vmul.f32 %v1170, %v1180
        %v1207 = vmul.f32 %v1171, %v1180
        %v1208 = vmul.f32 %v1172, %v1180
        %v1209 = vmul.f32 %v1173, %v1180
        %v1210 = vmul.f32 %v1174, %v1180
        %v1211 = vmul.f32 %v1175, %v1180
        %v1212 = vmul.f32 %v1176, %v1180
        %v1213 = vsel %vm534, %v1181, 0.0
        %1214 = vadd.xlane.f32.xlu0 %v1213
        %v1215 = vpop.xlane.xlu0 %1214
        %v1216 = vsel %vm534, %v1182, 0.0
        %1217 = vadd.xlane.f32.xlu0 %v1216
        %v1218 = vpop.xlane.xlu0 %1217
        %v1219 = vsel %vm534, %v1183, 0.0
        %1220 = vadd.xlane.f32.xlu0 %v1219
        %v1221 = vpop.xlane.xlu0 %1220
        %v1222 = vsel %vm534, %v1184, 0.0
        %1223 = vadd.xlane.f32.xlu0 %v1222
        %v1224 = vpop.xlane.xlu0 %1223
        %v1225 = vsel %vm534, %v1185, 0.0
        %1226 = vadd.xlane.f32.xlu0 %v1225
        %v1227 = vpop.xlane.xlu0 %1226
        %v1228 = vsel %vm534, %v1186, 0.0
        %1229 = vadd.xlane.f32.xlu0 %v1228
        %v1230 = vpop.xlane.xlu0 %1229
        %v1231 = vsel %vm534, %v1187, 0.0
        %1232 = vadd.xlane.f32.xlu0 %v1231
        %v1233 = vpop.xlane.xlu0 %1232
        %v1234 = vsel %vm534, %v1188, 0.0
        %1235 = vadd.xlane.f32.xlu0 %v1234
        %v1236 = vpop.xlane.xlu0 %1235
        %v1237 = vsel %vm534, %v1189, 0.0
        %1238 = vadd.xlane.f32.xlu0 %v1237
        %v1239 = vpop.xlane.xlu0 %1238
        %v1240 = vsel %vm534, %v1190, 0.0
        %1241 = vadd.xlane.f32.xlu0 %v1240
        %v1242 = vpop.xlane.xlu0 %1241
        %v1243 = vsel %vm534, %v1191, 0.0
        %1244 = vadd.xlane.f32.xlu0 %v1243
        %v1245 = vpop.xlane.xlu0 %1244
        %v1246 = vsel %vm534, %v1192, 0.0
        %1247 = vadd.xlane.f32.xlu0 %v1246
        %v1248 = vpop.xlane.xlu0 %1247
        %v1249 = vsel %vm534, %v1193, 0.0
        %1250 = vadd.xlane.f32.xlu0 %v1249
        %v1251 = vpop.xlane.xlu0 %1250
        %v1252 = vsel %vm534, %v1194, 0.0
        %1253 = vadd.xlane.f32.xlu0 %v1252
        %v1254 = vpop.xlane.xlu0 %1253
        %v1255 = vsel %vm534, %v1195, 0.0
        %1256 = vadd.xlane.f32.xlu0 %v1255
        %v1257 = vpop.xlane.xlu0 %1256
        %v1258 = vsel %vm534, %v1196, 0.0
        %1259 = vadd.xlane.f32.xlu0 %v1258
        %v1260 = vpop.xlane.xlu0 %1259
        %v1261 = vsel %vm534, %v1197, 0.0
        %1262 = vadd.xlane.f32.xlu0 %v1261
        %v1263 = vpop.xlane.xlu0 %1262
        %v1264 = vsel %vm534, %v1198, 0.0
        %1265 = vadd.xlane.f32.xlu0 %v1264
        %v1266 = vpop.xlane.xlu0 %1265
        %v1267 = vsel %vm534, %v1199, 0.0
        %1268 = vadd.xlane.f32.xlu0 %v1267
        %v1269 = vpop.xlane.xlu0 %1268
        %v1270 = vsel %vm534, %v1200, 0.0
        %1271 = vadd.xlane.f32.xlu0 %v1270
        %v1272 = vpop.xlane.xlu0 %1271
        %v1273 = vsel %vm534, %v1201, 0.0
        %1274 = vadd.xlane.f32.xlu0 %v1273
        %v1275 = vpop.xlane.xlu0 %1274
        %v1276 = vsel %vm534, %v1202, 0.0
        %1277 = vadd.xlane.f32.xlu0 %v1276
        %v1278 = vpop.xlane.xlu0 %1277
        %v1279 = vsel %vm534, %v1203, 0.0
        %1280 = vadd.xlane.f32.xlu0 %v1279
        %v1281 = vpop.xlane.xlu0 %1280
        %v1282 = vsel %vm534, %v1204, 0.0
        %1283 = vadd.xlane.f32.xlu0 %v1282
        %v1284 = vpop.xlane.xlu0 %1283
        %v1285 = vsel %vm534, %v1205, 0.0
        %1286 = vadd.xlane.f32.xlu0 %v1285
        %v1287 = vpop.xlane.xlu0 %1286
        %v1288 = vsel %vm534, %v1206, 0.0
        %1289 = vadd.xlane.f32.xlu0 %v1288
        %v1290 = vpop.xlane.xlu0 %1289
        %v1291 = vsel %vm534, %v1207, 0.0
        %1292 = vadd.xlane.f32.xlu0 %v1291
        %v1293 = vpop.xlane.xlu0 %1292
        %v1294 = vsel %vm534, %v1208, 0.0
        %1295 = vadd.xlane.f32.xlu0 %v1294
        %v1296 = vpop.xlane.xlu0 %1295
        %v1297 = vsel %vm534, %v1209, 0.0
        %1298 = vadd.xlane.f32.xlu0 %v1297
        %v1299 = vpop.xlane.xlu0 %1298
        %v1300 = vsel %vm534, %v1210, 0.0
        %1301 = vadd.xlane.f32.xlu0 %v1300
        %v1302 = vpop.xlane.xlu0 %1301
        %v1303 = vsel %vm534, %v1211, 0.0
        %1304 = vadd.xlane.f32.xlu0 %v1303
        %v1305 = vpop.xlane.xlu0 %1304
        %v1306 = vsel %vm534, %v1212, 0.0
        %1307 = vadd.xlane.f32.xlu0 %v1306
        %v1308 = vpop.xlane.xlu0 %1307
        %v1309 = vstv %s427
        %v1310 = vadd.f32 %v1215, %v1309
        %v1311 = vadd.f32 %v1218, %v1309
        %v1312 = vadd.f32 %v1221, %v1309
        %v1313 = vadd.f32 %v1224, %v1309
        %v1314 = vadd.f32 %v1227, %v1309
        %v1315 = vadd.f32 %v1230, %v1309
        %v1316 = vadd.f32 %v1233, %v1309
        %v1317 = vadd.f32 %v1236, %v1309
        %v1318 = vadd.f32 %v1239, %v1309
        %v1319 = vadd.f32 %v1242, %v1309
        %v1320 = vadd.f32 %v1245, %v1309
        %v1321 = vadd.f32 %v1248, %v1309
        %v1322 = vadd.f32 %v1251, %v1309
        %v1323 = vadd.f32 %v1254, %v1309
        %v1324 = vadd.f32 %v1257, %v1309
        %v1325 = vadd.f32 %v1260, %v1309
        %v1326 = vadd.f32 %v1263, %v1309
        %v1327 = vadd.f32 %v1266, %v1309
        %v1328 = vadd.f32 %v1269, %v1309
        %v1329 = vadd.f32 %v1272, %v1309
        %v1330 = vadd.f32 %v1275, %v1309
        %v1331 = vadd.f32 %v1278, %v1309
        %v1332 = vadd.f32 %v1281, %v1309
        %v1333 = vadd.f32 %v1284, %v1309
        %v1334 = vadd.f32 %v1287, %v1309
        %v1335 = vadd.f32 %v1290, %v1309
        %v1336 = vadd.f32 %v1293, %v1309
        %v1337 = vadd.f32 %v1296, %v1309
        %v1338 = vadd.f32 %v1299, %v1309
        %v1339 = vadd.f32 %v1302, %v1309
        %v1340 = vadd.f32 %v1305, %v1309
        %v1341 = vadd.f32 %v1308, %v1309
        %v1342 = vlaneseq
        %v1343 = vshrl.u32 %v1342, 7
        %v1344 = vlaneseq
        %v1345 = vand.u32 %v1344, 127
        %vm1346 = vcmp.eq.s32.totalorder %v1343, %v1345
        %v1347 = vsel %vm1346, 1, 0
        %vm1348 = vcmp.eq.s32.totalorder %v1347, 1
        %v1381 = vlaneseq
        %v1382 = vshrl.u32 %v1381, 7
        %v1383 = vsub.s32 %v1345, %v1382
        %v1384 = vrot.slane %v1310, %v1383
        %v1385 = vlaneseq
        %v1386 = vshrl.u32 %v1385, 7
        %v1387 = vsub.s32 %v1345, %v1386
        %v1388 = vrot.slane %v1311, %v1387
        %v1389 = vlaneseq
        %v1390 = vshrl.u32 %v1389, 7
        %v1391 = vsub.s32 %v1345, %v1390
        %v1392 = vrot.slane %v1312, %v1391
        %v1393 = vlaneseq
        %v1394 = vshrl.u32 %v1393, 7
        %v1395 = vsub.s32 %v1345, %v1394
        %v1396 = vrot.slane %v1313, %v1395
        %v1397 = vlaneseq
        %v1398 = vshrl.u32 %v1397, 7
        %v1399 = vsub.s32 %v1345, %v1398
        %v1400 = vrot.slane %v1314, %v1399
        %v1401 = vlaneseq
        %v1402 = vshrl.u32 %v1401, 7
        %v1403 = vsub.s32 %v1345, %v1402
        %v1404 = vrot.slane %v1315, %v1403
        %v1405 = vlaneseq
        %v1406 = vshrl.u32 %v1405, 7
        %v1407 = vsub.s32 %v1345, %v1406
        %v1408 = vrot.slane %v1316, %v1407
        %v1409 = vlaneseq
        %v1410 = vshrl.u32 %v1409, 7
        %v1411 = vsub.s32 %v1345, %v1410
        %v1412 = vrot.slane %v1317, %v1411
        %v1413 = vlaneseq
        %v1414 = vshrl.u32 %v1413, 7
        %v1415 = vsub.s32 %v1345, %v1414
        %v1416 = vrot.slane %v1318, %v1415
        %v1417 = vlaneseq
        %v1418 = vshrl.u32 %v1417, 7
        %v1419 = vsub.s32 %v1345, %v1418
        %v1420 = vrot.slane %v1319, %v1419
        %v1421 = vlaneseq
        %v1422 = vshrl.u32 %v1421, 7
        %v1423 = vsub.s32 %v1345, %v1422
        %v1424 = vrot.slane %v1320, %v1423
        %v1425 = vlaneseq
        %v1426 = vshrl.u32 %v1425, 7
        %v1427 = vsub.s32 %v1345, %v1426
        %v1428 = vrot.slane %v1321, %v1427
        %v1429 = vlaneseq
        %v1430 = vshrl.u32 %v1429, 7
        %v1431 = vsub.s32 %v1345, %v1430
        %v1432 = vrot.slane %v1322, %v1431
        %v1433 = vlaneseq
        %v1434 = vshrl.u32 %v1433, 7
        %v1435 = vsub.s32 %v1345, %v1434
        %v1436 = vrot.slane %v1323, %v1435
        %v1437 = vlaneseq
        %v1438 = vshrl.u32 %v1437, 7
        %v1439 = vsub.s32 %v1345, %v1438
        %v1440 = vrot.slane %v1324, %v1439
        %v1441 = vlaneseq
        %v1442 = vshrl.u32 %v1441, 7
        %v1443 = vsub.s32 %v1345, %v1442
        %v1444 = vrot.slane %v1325, %v1443
        %v1445 = vlaneseq
        %v1446 = vshrl.u32 %v1445, 7
        %v1447 = vsub.s32 %v1345, %v1446
        %v1448 = vrot.slane %v1326, %v1447
        %v1449 = vlaneseq
        %v1450 = vshrl.u32 %v1449, 7
        %v1451 = vsub.s32 %v1345, %v1450
        %v1452 = vrot.slane %v1327, %v1451
        %v1453 = vlaneseq
        %v1454 = vshrl.u32 %v1453, 7
        %v1455 = vsub.s32 %v1345, %v1454
        %v1456 = vrot.slane %v1328, %v1455
        %v1457 = vlaneseq
        %v1458 = vshrl.u32 %v1457, 7
        %v1459 = vsub.s32 %v1345, %v1458
        %v1460 = vrot.slane %v1329, %v1459
        %v1461 = vlaneseq
        %v1462 = vshrl.u32 %v1461, 7
        %v1463 = vsub.s32 %v1345, %v1462
        %v1464 = vrot.slane %v1330, %v1463
        %v1465 = vlaneseq
        %v1466 = vshrl.u32 %v1465, 7
        %v1467 = vsub.s32 %v1345, %v1466
        %v1468 = vrot.slane %v1331, %v1467
        %v1469 = vlaneseq
        %v1470 = vshrl.u32 %v1469, 7
        %v1471 = vsub.s32 %v1345, %v1470
        %v1472 = vrot.slane %v1332, %v1471
        %v1473 = vlaneseq
        %v1474 = vshrl.u32 %v1473, 7
        %v1475 = vsub.s32 %v1345, %v1474
        %v1476 = vrot.slane %v1333, %v1475
        %v1477 = vlaneseq
        %v1478 = vshrl.u32 %v1477, 7
        %v1479 = vsub.s32 %v1345, %v1478
        %v1480 = vrot.slane %v1334, %v1479
        %v1481 = vlaneseq
        %v1482 = vshrl.u32 %v1481, 7
        %v1483 = vsub.s32 %v1345, %v1482
        %v1484 = vrot.slane %v1335, %v1483
        %v1485 = vlaneseq
        %v1486 = vshrl.u32 %v1485, 7
        %v1487 = vsub.s32 %v1345, %v1486
        %v1488 = vrot.slane %v1336, %v1487
        %v1489 = vlaneseq
        %v1490 = vshrl.u32 %v1489, 7
        %v1491 = vsub.s32 %v1345, %v1490
        %v1492 = vrot.slane %v1337, %v1491
        %v1493 = vlaneseq
        %v1494 = vshrl.u32 %v1493, 7
        %v1495 = vsub.s32 %v1345, %v1494
        %v1496 = vrot.slane %v1338, %v1495
        %v1497 = vlaneseq
        %v1498 = vshrl.u32 %v1497, 7
        %v1499 = vsub.s32 %v1345, %v1498
        %v1500 = vrot.slane %v1339, %v1499
        %v1501 = vlaneseq
        %v1502 = vshrl.u32 %v1501, 7
        %v1503 = vsub.s32 %v1345, %v1502
        %v1504 = vrot.slane %v1340, %v1503
        %v1505 = vlaneseq
        %v1506 = vshrl.u32 %v1505, 7
        %v1507 = vsub.s32 %v1345, %v1506
        %v1508 = vrot.slane %v1341, %v1507
        %vm1509 = vcmask 1041409
        %v1510 = vsel %vm1509, %v1388, %v1384
        %vm1511 = vcmask 1042434
        %v1512 = vsel %vm1511, %v1392, %v1510
        %vm1513 = vcmask 1043459
        %v1514 = vsel %vm1513, %v1396, %v1512
        %vm1515 = vcmask 1044484
        %v1516 = vsel %vm1515, %v1400, %v1514
        %vm1517 = vcmask 1045509
        %v1518 = vsel %vm1517, %v1404, %v1516
        %vm1519 = vcmask 1046534
        %v1520 = vsel %vm1519, %v1408, %v1518
        %vm1521 = vcmask 1047559
        %v1522 = vsel %vm1521, %v1412, %v1520
        %v1523 = vsel %vm1509, %v1420, %v1416
        %v1524 = vsel %vm1511, %v1424, %v1523
        %v1525 = vsel %vm1513, %v1428, %v1524
        %v1526 = vsel %vm1515, %v1432, %v1525
        %v1527 = vsel %vm1517, %v1436, %v1526
        %v1528 = vsel %vm1519, %v1440, %v1527
        %v1529 = vsel %vm1521, %v1444, %v1528
        %v1530 = vsel %vm1509, %v1452, %v1448
        %v1531 = vsel %vm1511, %v1456, %v1530
        %v1532 = vsel %vm1513, %v1460, %v1531
        %v1533 = vsel %vm1515, %v1464, %v1532
        %v1534 = vsel %vm1517, %v1468, %v1533
        %v1535 = vsel %vm1519, %v1472, %v1534
        %v1536 = vsel %vm1521, %v1476, %v1535
        %v1537 = vsel %vm1509, %v1484, %v1480
        %v1538 = vsel %vm1511, %v1488, %v1537
        %v1539 = vsel %vm1513, %v1492, %v1538
        %v1540 = vsel %vm1515, %v1496, %v1539
        %v1541 = vsel %vm1517, %v1500, %v1540
        %v1542 = vsel %vm1519, %v1504, %v1541
        %v1543 = vsel %vm1521, %v1508, %v1542
        %v1548 = vsel %vm1348, -inf, %v1522
        %v1549 = vsel %vm1348, -inf, %v1529
        %v1550 = vsel %vm1348, -inf, %v1536
        %v1551 = vsel %vm1348, -inf, %v1543
        %vm1552 = vcmask 64512
        %v1553 = vsel %vm1552, %v1548, -inf
        %1554 = vmax.xlane.f32.xlu0 %v1553
        %v1555 = vpop.xlane.xlu0 %1554
        %v1556 = vsel %vm1552, %v1549, -inf
        %1557 = vmax.xlane.f32.xlu0 %v1556
        %v1558 = vpop.xlane.xlu0 %1557
        %v1559 = vsel %vm1552, %v1550, -inf
        %1560 = vmax.xlane.f32.xlu0 %v1559
        %v1561 = vpop.xlane.xlu0 %1560
        %v1562 = vsel %vm1552, %v1551, -inf
        %1563 = vmax.xlane.f32.xlu0 %v1562
        %v1564 = vpop.xlane.xlu0 %1563
        %v1565 = vsub.f32 %v1548, %v1555
        %v1566 = vsub.f32 %v1549, %v1558
        %v1567 = vsub.f32 %v1550, %v1561
        %v1568 = vsub.f32 %v1551, %v1564
        %v1569 = vmul.f32 %v1565, 1.442695
        %v1570 = vpow.pop %v1569
        %v1571 = vmul.f32 %v1566, 1.442695
        %v1572 = vpow.pop %v1571
        %v1573 = vmul.f32 %v1567, 1.442695
        %v1574 = vpow.pop %v1573
        %v1575 = vmul.f32 %v1568, 1.442695
        %v1576 = vpow.pop %v1575
        %v1577 = vsel %vm1552, %v1570, 0.0
        %1578 = vadd.xlane.f32.xlu0 %v1577
        %v1579 = vpop.xlane.xlu0 %1578
        %v1580 = vsel %vm1552, %v1572, 0.0
        %1581 = vadd.xlane.f32.xlu0 %v1580
        %v1582 = vpop.xlane.xlu0 %1581
        %v1583 = vsel %vm1552, %v1574, 0.0
        %1584 = vadd.xlane.f32.xlu0 %v1583
        %v1585 = vpop.xlane.xlu0 %1584
        %v1586 = vsel %vm1552, %v1576, 0.0
        %1587 = vadd.xlane.f32.xlu0 %v1586
        %v1588 = vpop.xlane.xlu0 %1587
        %v1589 = vrcp.pop %v1579
        %v1590 = vrcp.pop %v1582
        %v1591 = vrcp.pop %v1585
        %v1592 = vrcp.pop %v1588
        %v1593 = vmul.f32 %v1579, %v1589
        %v1594 = vmul.f32 %v1582, %v1590
        %v1595 = vmul.f32 %v1585, %v1591
        %v1596 = vmul.f32 %v1588, %v1592
        %v1597 = vsub.f32 2.0, %v1593
        %v1598 = vsub.f32 2.0, %v1594
        %v1599 = vsub.f32 2.0, %v1595
        %v1600 = vsub.f32 2.0, %v1596
        %v1601 = vmul.f32 %v1589, %v1597
        %v1602 = vmul.f32 %v1590, %v1598
        %v1603 = vmul.f32 %v1591, %v1599
        %v1604 = vmul.f32 %v1592, %v1600
        %v1605 = vmul.f32 %v1570, %v1601
        %v1606 = vmul.f32 %v1572, %v1602
        %v1607 = vmul.f32 %v1574, %v1603
        %v1608 = vmul.f32 %v1576, %v1604
        %v1609 = vsel %vm1552, %v1605, 0.0
        %v1610 = vrot.slane %v1609, 4
        %v1611 = vadd.f32 %v1609, %v1610
        %v1612 = vrot.slane %v1611, 2
        %v1613 = vadd.f32 %v1611, %v1612
        %v1614 = vrot.slane %v1613, 1
        %v1615 = vadd.f32 %v1613, %v1614
        %v1616 = vsel %vm1552, %v1606, 0.0
        %v1617 = vrot.slane %v1616, 4
        %v1618 = vadd.f32 %v1616, %v1617
        %v1619 = vrot.slane %v1618, 2
        %v1620 = vadd.f32 %v1618, %v1619
        %v1621 = vrot.slane %v1620, 1
        %v1622 = vadd.f32 %v1620, %v1621
        %v1623 = vsel %vm1552, %v1607, 0.0
        %v1624 = vrot.slane %v1623, 4
        %v1625 = vadd.f32 %v1623, %v1624
        %v1626 = vrot.slane %v1625, 2
        %v1627 = vadd.f32 %v1625, %v1626
        %v1628 = vrot.slane %v1627, 1
        %v1629 = vadd.f32 %v1627, %v1628
        %v1630 = vsel %vm1552, %v1608, 0.0
        %v1631 = vrot.slane %v1630, 4
        %v1632 = vadd.f32 %v1630, %v1631
        %v1633 = vrot.slane %v1632, 2
        %v1634 = vadd.f32 %v1632, %v1633
        %v1635 = vrot.slane %v1634, 1
        %v1636 = vadd.f32 %v1634, %v1635
        %vm1637 = vcmask 57344
        %1638 = vst.msk [vmem:[%s404] sm:$0x1] %vm1637, %v1615
        %1639 = vst.msk [vmem:[%s404 + $0x1] sm:$0x1] %vm1637, %v1622
        %1640 = vst.msk [vmem:[%s404 + $0x2] sm:$0x1] %vm1637, %v1629
        %1641 = vst.msk [vmem:[%s404 + $0x3] sm:$0x1] %vm1637, %v1636
        %v1643 = vsel %vm1552, %v1605, 0
        %1645 = vmatprep.subr.mxu0 0.0
        %1646 = vmatpush1.msra.mxu0 %v516
        %1647 = vmatprep.subr.mxu0 0.0
        %1648 = vmatpush1.msra.mxu0 0.0
        %1649 = vmatprep.subr.mxu0 0.0
        %1650 = vmatpush1.msra.mxu0 0.0
        %1651 = vmatprep.subr.mxu0 0.0
        %1652 = vmatpush1.msra.mxu0 0.0
        %1653 = vmatprep.subr.mxu0 0.0
        %1654 = vmatpush1.msra.mxu0 0.0
        %1655 = vmatprep.subr.mxu0 0.0
        %1656 = vmatpush1.msra.mxu0 0.0
        %1657 = vmatprep.subr.mxu0 0.0
        %1658 = vmatpush1.msra.mxu0 0.0
        %1659 = vmatprep.subr.mxu0 0.0
        %1660 = vmatpush1.msra.mxu0 0.0
        %1661 = vmatprep.subr.mxu0 0.0
        %1662 = vmatpush1.msra.mxu0 0.0
        %1663 = vmatprep.subr.mxu0 0.0
        %1664 = vmatpush1.msra.mxu0 0.0
        %1665 = vmatprep.subr.mxu0 0.0
        %1666 = vmatpush1.msra.mxu0 0.0
        %1667 = vmatprep.subr.mxu0 0.0
        %1668 = vmatpush1.msra.mxu0 0.0
        %1669 = vmatprep.subr.mxu0 0.0
        %1670 = vmatpush1.msra.mxu0 0.0
        %1671 = vmatprep.subr.mxu0 0.0
        %1672 = vmatpush1.msra.mxu0 0.0
        %1673 = vmatprep.subr.mxu0 0.0
        %1674 = vmatpush1.msra.mxu0 0.0
        %1675 = vmatprep.subr.mxu0 0.0
        %1676 = vmatpush1.msra.mxu0 0.0
        %1677 = vmatprep.subr.mxu0 0.0
        %1678 = vmatpush1.msra.mxu0 0.0
        %1679 = vmatprep.subr.mxu0 0.0
        %1680 = vmatpush1.msra.mxu0 0.0
        %1681 = vmatprep.subr.mxu0 0.0
        %1682 = vmatpush1.msra.mxu0 0.0
        %1683 = vmatprep.subr.mxu0 0.0
        %1684 = vmatpush1.msra.mxu0 0.0
        %1685 = vmatprep.subr.mxu0 0.0
        %1686 = vmatpush1.msra.mxu0 0.0
        %1687 = vmatprep.subr.mxu0 0.0
        %1688 = vmatpush1.msra.mxu0 0.0
        %1689 = vmatprep.subr.mxu0 0.0
        %1690 = vmatpush1.msra.mxu0 0.0
        %1691 = vmatprep.subr.mxu0 0.0
        %1692 = vmatpush1.msra.mxu0 0.0
        %1693 = vmatprep.subr.mxu0 0.0
        %1694 = vmatpush1.msra.mxu0 0.0
        %1695 = vmatprep.subr.mxu0 0.0
        %1696 = vmatpush1.msra.mxu0 0.0
        %1697 = vmatprep.subr.mxu0 0.0
        %1698 = vmatpush1.msra.mxu0 0.0
        %1699 = vmatprep.subr.mxu0 0.0
        %1700 = vmatpush1.msra.mxu0 0.0
        %1701 = vmatprep.subr.mxu0 0.0
        %1702 = vmatpush1.msra.mxu0 0.0
        %1703 = vmatprep.subr.mxu0 0.0
        %1704 = vmatpush1.msra.mxu0 0.0
        %1705 = vmatprep.subr.mxu0 0.0
        %1706 = vmatpush1.msra.mxu0 0.0
        %1707 = vmatprep.subr.mxu0 0.0
        %1708 = vmatpush1.msra.mxu0 0.0
        %1709 = vmatprep.mubr.f32.mxu0 0.0
        %1710 = vmatmul.mubr.f32.gmra.mrb[0].mxu0 %v1643
        %v1711 = vpop.f32.mrb[0].mxu0
        %v1712 = vadd.f32 0.0, %v1711
        %v1713 = vpop.f32.mrb[0].mxu0
        %1714 = vdwg.mxu0
        %v1716 = vsel %vm1552, %v1606, 0
        %1718 = vmatprep.subr.mxu0 0.0
        %1719 = vmatpush1.msra.mxu0 %v521
        %1720 = vmatprep.subr.mxu0 0.0
        %1721 = vmatpush1.msra.mxu0 0.0
        %1722 = vmatprep.subr.mxu0 0.0
        %1723 = vmatpush1.msra.mxu0 0.0
        %1724 = vmatprep.subr.mxu0 0.0
        %1725 = vmatpush1.msra.mxu0 0.0
        %1726 = vmatprep.subr.mxu0 0.0
        %1727 = vmatpush1.msra.mxu0 0.0
        %1728 = vmatprep.subr.mxu0 0.0
        %1729 = vmatpush1.msra.mxu0 0.0
        %1730 = vmatprep.subr.mxu0 0.0
        %1731 = vmatpush1.msra.mxu0 0.0
        %1732 = vmatprep.subr.mxu0 0.0
        %1733 = vmatpush1.msra.mxu0 0.0
        %1734 = vmatprep.subr.mxu0 0.0
        %1735 = vmatpush1.msra.mxu0 0.0
        %1736 = vmatprep.subr.mxu0 0.0
        %1737 = vmatpush1.msra.mxu0 0.0
        %1738 = vmatprep.subr.mxu0 0.0
        %1739 = vmatpush1.msra.mxu0 0.0
        %1740 = vmatprep.subr.mxu0 0.0
        %1741 = vmatpush1.msra.mxu0 0.0
        %1742 = vmatprep.subr.mxu0 0.0
        %1743 = vmatpush1.msra.mxu0 0.0
        %1744 = vmatprep.subr.mxu0 0.0
        %1745 = vmatpush1.msra.mxu0 0.0
        %1746 = vmatprep.subr.mxu0 0.0
        %1747 = vmatpush1.msra.mxu0 0.0
        %1748 = vmatprep.subr.mxu0 0.0
        %1749 = vmatpush1.msra.mxu0 0.0
        %1750 = vmatprep.subr.mxu0 0.0
        %1751 = vmatpush1.msra.mxu0 0.0
        %1752 = vmatprep.subr.mxu0 0.0
        %1753 = vmatpush1.msra.mxu0 0.0
        %1754 = vmatprep.subr.mxu0 0.0
        %1755 = vmatpush1.msra.mxu0 0.0
        %1756 = vmatprep.subr.mxu0 0.0
        %1757 = vmatpush1.msra.mxu0 0.0
        %1758 = vmatprep.subr.mxu0 0.0
        %1759 = vmatpush1.msra.mxu0 0.0
        %1760 = vmatprep.subr.mxu0 0.0
        %1761 = vmatpush1.msra.mxu0 0.0
        %1762 = vmatprep.subr.mxu0 0.0
        %1763 = vmatpush1.msra.mxu0 0.0
        %1764 = vmatprep.subr.mxu0 0.0
        %1765 = vmatpush1.msra.mxu0 0.0
        %1766 = vmatprep.subr.mxu0 0.0
        %1767 = vmatpush1.msra.mxu0 0.0
        %1768 = vmatprep.subr.mxu0 0.0
        %1769 = vmatpush1.msra.mxu0 0.0
        %1770 = vmatprep.subr.mxu0 0.0
        %1771 = vmatpush1.msra.mxu0 0.0
        %1772 = vmatprep.subr.mxu0 0.0
        %1773 = vmatpush1.msra.mxu0 0.0
        %1774 = vmatprep.subr.mxu0 0.0
        %1775 = vmatpush1.msra.mxu0 0.0
        %1776 = vmatprep.subr.mxu0 0.0
        %1777 = vmatpush1.msra.mxu0 0.0
        %1778 = vmatprep.subr.mxu0 0.0
        %1779 = vmatpush1.msra.mxu0 0.0
        %1780 = vmatprep.subr.mxu0 0.0
        %1781 = vmatpush1.msra.mxu0 0.0
        %1782 = vmatprep.mubr.f32.mxu0 0.0
        %1783 = vmatmul.mubr.f32.gmra.mrb[0].mxu0 %v1716
        %v1784 = vpop.f32.mrb[0].mxu0
        %v1785 = vadd.f32 0.0, %v1784
        %v1786 = vpop.f32.mrb[0].mxu0
        %1787 = vdwg.mxu0
        %v1789 = vsel %vm1552, %v1607, 0
        %1791 = vmatprep.subr.mxu0 0.0
        %1792 = vmatpush1.msra.mxu0 %v526
        %1793 = vmatprep.subr.mxu0 0.0
        %1794 = vmatpush1.msra.mxu0 0.0
        %1795 = vmatprep.subr.mxu0 0.0
        %1796 = vmatpush1.msra.mxu0 0.0
        %1797 = vmatprep.subr.mxu0 0.0
        %1798 = vmatpush1.msra.mxu0 0.0
        %1799 = vmatprep.subr.mxu0 0.0
        %1800 = vmatpush1.msra.mxu0 0.0
        %1801 = vmatprep.subr.mxu0 0.0
        %1802 = vmatpush1.msra.mxu0 0.0
        %1803 = vmatprep.subr.mxu0 0.0
        %1804 = vmatpush1.msra.mxu0 0.0
        %1805 = vmatprep.subr.mxu0 0.0
        %1806 = vmatpush1.msra.mxu0 0.0
        %1807 = vmatprep.subr.mxu0 0.0
        %1808 = vmatpush1.msra.mxu0 0.0
        %1809 = vmatprep.subr.mxu0 0.0
        %1810 = vmatpush1.msra.mxu0 0.0
        %1811 = vmatprep.subr.mxu0 0.0
        %1812 = vmatpush1.msra.mxu0 0.0
        %1813 = vmatprep.subr.mxu0 0.0
        %1814 = vmatpush1.msra.mxu0 0.0
        %1815 = vmatprep.subr.mxu0 0.0
        %1816 = vmatpush1.msra.mxu0 0.0
        %1817 = vmatprep.subr.mxu0 0.0
        %1818 = vmatpush1.msra.mxu0 0.0
        %1819 = vmatprep.subr.mxu0 0.0
        %1820 = vmatpush1.msra.mxu0 0.0
        %1821 = vmatprep.subr.mxu0 0.0
        %1822 = vmatpush1.msra.mxu0 0.0
        %1823 = vmatprep.subr.mxu0 0.0
        %1824 = vmatpush1.msra.mxu0 0.0
        %1825 = vmatprep.subr.mxu0 0.0
        %1826 = vmatpush1.msra.mxu0 0.0
        %1827 = vmatprep.subr.mxu0 0.0
        %1828 = vmatpush1.msra.mxu0 0.0
        %1829 = vmatprep.subr.mxu0 0.0
        %1830 = vmatpush1.msra.mxu0 0.0
        %1831 = vmatprep.subr.mxu0 0.0
        %1832 = vmatpush1.msra.mxu0 0.0
        %1833 = vmatprep.subr.mxu0 0.0
        %1834 = vmatpush1.msra.mxu0 0.0
        %1835 = vmatprep.subr.mxu0 0.0
        %1836 = vmatpush1.msra.mxu0 0.0
        %1837 = vmatprep.subr.mxu0 0.0
        %1838 = vmatpush1.msra.mxu0 0.0
        %1839 = vmatprep.subr.mxu0 0.0
        %1840 = vmatpush1.msra.mxu0 0.0
        %1841 = vmatprep.subr.mxu0 0.0
        %1842 = vmatpush1.msra.mxu0 0.0
        %1843 = vmatprep.subr.mxu0 0.0
        %1844 = vmatpush1.msra.mxu0 0.0
        %1845 = vmatprep.subr.mxu0 0.0
        %1846 = vmatpush1.msra.mxu0 0.0
        %1847 = vmatprep.subr.mxu0 0.0
        %1848 = vmatpush1.msra.mxu0 0.0
        %1849 = vmatprep.subr.mxu0 0.0
        %1850 = vmatpush1.msra.mxu0 0.0
        %1851 = vmatprep.subr.mxu0 0.0
        %1852 = vmatpush1.msra.mxu0 0.0
        %1853 = vmatprep.subr.mxu0 0.0
        %1854 = vmatpush1.msra.mxu0 0.0
        %1855 = vmatprep.mubr.f32.mxu0 0.0
        %1856 = vmatmul.mubr.f32.gmra.mrb[0].mxu0 %v1789
        %v1857 = vpop.f32.mrb[0].mxu0
        %v1858 = vadd.f32 0.0, %v1857
        %v1859 = vpop.f32.mrb[0].mxu0
        %1860 = vdwg.mxu0
        %v1862 = vsel %vm1552, %v1608, 0
        %1864 = vmatprep.subr.mxu0 0.0
        %1865 = vmatpush1.msra.mxu0 %v531
        %1866 = vmatprep.subr.mxu0 0.0
        %1867 = vmatpush1.msra.mxu0 0.0
        %1868 = vmatprep.subr.mxu0 0.0
        %1869 = vmatpush1.msra.mxu0 0.0
        %1870 = vmatprep.subr.mxu0 0.0
        %1871 = vmatpush1.msra.mxu0 0.0
        %1872 = vmatprep.subr.mxu0 0.0
        %1873 = vmatpush1.msra.mxu0 0.0
        %1874 = vmatprep.subr.mxu0 0.0
        %1875 = vmatpush1.msra.mxu0 0.0
        %1876 = vmatprep.subr.mxu0 0.0
        %1877 = vmatpush1.msra.mxu0 0.0
        %1878 = vmatprep.subr.mxu0 0.0
        %1879 = vmatpush1.msra.mxu0 0.0
        %1880 = vmatprep.subr.mxu0 0.0
        %1881 = vmatpush1.msra.mxu0 0.0
        %1882 = vmatprep.subr.mxu0 0.0
        %1883 = vmatpush1.msra.mxu0 0.0
        %1884 = vmatprep.subr.mxu0 0.0
        %1885 = vmatpush1.msra.mxu0 0.0
        %1886 = vmatprep.subr.mxu0 0.0
        %1887 = vmatpush1.msra.mxu0 0.0
        %1888 = vmatprep.subr.mxu0 0.0
        %1889 = vmatpush1.msra.mxu0 0.0
        %1890 = vmatprep.subr.mxu0 0.0
        %1891 = vmatpush1.msra.mxu0 0.0
        %1892 = vmatprep.subr.mxu0 0.0
        %1893 = vmatpush1.msra.mxu0 0.0
        %1894 = vmatprep.subr.mxu0 0.0
        %1895 = vmatpush1.msra.mxu0 0.0
        %1896 = vmatprep.subr.mxu0 0.0
        %1897 = vmatpush1.msra.mxu0 0.0
        %1898 = vmatprep.subr.mxu0 0.0
        %1899 = vmatpush1.msra.mxu0 0.0
        %1900 = vmatprep.subr.mxu0 0.0
        %1901 = vmatpush1.msra.mxu0 0.0
        %1902 = vmatprep.subr.mxu0 0.0
        %1903 = vmatpush1.msra.mxu0 0.0
        %1904 = vmatprep.subr.mxu0 0.0
        %1905 = vmatpush1.msra.mxu0 0.0
        %1906 = vmatprep.subr.mxu0 0.0
        %1907 = vmatpush1.msra.mxu0 0.0
        %1908 = vmatprep.subr.mxu0 0.0
        %1909 = vmatpush1.msra.mxu0 0.0
        %1910 = vmatprep.subr.mxu0 0.0
        %1911 = vmatpush1.msra.mxu0 0.0
        %1912 = vmatprep.subr.mxu0 0.0
        %1913 = vmatpush1.msra.mxu0 0.0
        %1914 = vmatprep.subr.mxu0 0.0
        %1915 = vmatpush1.msra.mxu0 0.0
        %1916 = vmatprep.subr.mxu0 0.0
        %1917 = vmatpush1.msra.mxu0 0.0
        %1918 = vmatprep.subr.mxu0 0.0
        %1919 = vmatpush1.msra.mxu0 0.0
        %1920 = vmatprep.subr.mxu0 0.0
        %1921 = vmatpush1.msra.mxu0 0.0
        %1922 = vmatprep.subr.mxu0 0.0
        %1923 = vmatpush1.msra.mxu0 0.0
        %1924 = vmatprep.subr.mxu0 0.0
        %1925 = vmatpush1.msra.mxu0 0.0
        %1926 = vmatprep.subr.mxu0 0.0
        %1927 = vmatpush1.msra.mxu0 0.0
        %1928 = vmatprep.mubr.f32.mxu0 0.0
        %1929 = vmatmul.mubr.f32.gmra.mrb[0].mxu0 %v1862
        %v1930 = vpop.f32.mrb[0].mxu0
        %v1931 = vadd.f32 0.0, %v1930
        %v1932 = vpop.f32.mrb[0].mxu0
        %1933 = vdwg.mxu0
        %v1935 = vsel %vm534, %v1712, 0
        %v1938 = vsel %vm534, %v1785, 0
        %v1941 = vsel %vm534, %v1858, 0
        %v1944 = vsel %vm534, %v1931, 0
        %1946 = vmatprep.subr.mxu0 0.0
        %1947 = vmatpush1.msra.mxu0 %v418
        %1948 = vmatprep.subr.mxu0 0.0
        %1949 = vmatpush1.msra.mxu0 %v419
        %1950 = vmatprep.subr.mxu0 0.0
        %1951 = vmatpush1.msra.mxu0 %v420
        %1952 = vmatprep.subr.mxu0 0.0
        %1953 = vmatpush1.msra.mxu0 %v421
        %1954 = vmatprep.subr.mxu0 0.0
        %1955 = vmatpush1.msra.mxu0 0.0
        %1956 = vmatprep.subr.mxu0 0.0
        %1957 = vmatpush1.msra.mxu0 0.0
        %1958 = vmatprep.subr.mxu0 0.0
        %1959 = vmatpush1.msra.mxu0 0.0
        %1960 = vmatprep.subr.mxu0 0.0
        %1961 = vmatpush1.msra.mxu0 0.0
        %1962 = vmatprep.subr.mxu0 0.0
        %1963 = vmatpush1.msra.mxu0 0.0
        %1964 = vmatprep.subr.mxu0 0.0
        %1965 = vmatpush1.msra.mxu0 0.0
        %1966 = vmatprep.subr.mxu0 0.0
        %1967 = vmatpush1.msra.mxu0 0.0
        %1968 = vmatprep.subr.mxu0 0.0
        %1969 = vmatpush1.msra.mxu0 0.0
        %1970 = vmatprep.subr.mxu0 0.0
        %1971 = vmatpush1.msra.mxu0 0.0
        %1972 = vmatprep.subr.mxu0 0.0
        %1973 = vmatpush1.msra.mxu0 0.0
        %1974 = vmatprep.subr.mxu0 0.0
        %1975 = vmatpush1.msra.mxu0 0.0
        %1976 = vmatprep.subr.mxu0 0.0
        %1977 = vmatpush1.msra.mxu0 0.0
        %1978 = vmatprep.subr.mxu0 0.0
        %1979 = vmatpush1.msra.mxu0 0.0
        %1980 = vmatprep.subr.mxu0 0.0
        %1981 = vmatpush1.msra.mxu0 0.0
        %1982 = vmatprep.subr.mxu0 0.0
        %1983 = vmatpush1.msra.mxu0 0.0
        %1984 = vmatprep.subr.mxu0 0.0
        %1985 = vmatpush1.msra.mxu0 0.0
        %1986 = vmatprep.subr.mxu0 0.0
        %1987 = vmatpush1.msra.mxu0 0.0
        %1988 = vmatprep.subr.mxu0 0.0
        %1989 = vmatpush1.msra.mxu0 0.0
        %1990 = vmatprep.subr.mxu0 0.0
        %1991 = vmatpush1.msra.mxu0 0.0
        %1992 = vmatprep.subr.mxu0 0.0
        %1993 = vmatpush1.msra.mxu0 0.0
        %1994 = vmatprep.subr.mxu0 0.0
        %1995 = vmatpush1.msra.mxu0 0.0
        %1996 = vmatprep.subr.mxu0 0.0
        %1997 = vmatpush1.msra.mxu0 0.0
        %1998 = vmatprep.subr.mxu0 0.0
        %1999 = vmatpush1.msra.mxu0 0.0
        %2000 = vmatprep.subr.mxu0 0.0
        %2001 = vmatpush1.msra.mxu0 0.0
        %2002 = vmatprep.subr.mxu0 0.0
        %2003 = vmatpush1.msra.mxu0 0.0
        %2004 = vmatprep.subr.mxu0 0.0
        %2005 = vmatpush1.msra.mxu0 0.0
        %2006 = vmatprep.subr.mxu0 0.0
        %2007 = vmatpush1.msra.mxu0 0.0
        %2008 = vmatprep.subr.mxu0 0.0
        %2009 = vmatpush1.msra.mxu0 0.0
        %2010 = vmatprep.mubr.f32.mxu0 0.0
        %2011 = vmatmul.mubr.f32.gmra.mrb[0].mxu0 %v1935
        %v2012 = vpop.f32.mrb[0].mxu0
        %v2013 = vadd.f32 0.0, %v2012
        %v2014 = vpop.f32.mrb[0].mxu0
        %2015 = vmatprep.mubr.f32.mxu0 0.0
        %2016 = vmatmul.mubr.f32.gmra.mrb[0].mxu0 %v1938
        %v2017 = vpop.f32.mrb[0].mxu0
        %v2018 = vadd.f32 0.0, %v2017
        %v2019 = vpop.f32.mrb[0].mxu0
        %2020 = vmatprep.mubr.f32.mxu0 0.0
        %2021 = vmatmul.mubr.f32.gmra.mrb[0].mxu0 %v1941
        %v2022 = vpop.f32.mrb[0].mxu0
        %v2023 = vadd.f32 0.0, %v2022
        %v2024 = vpop.f32.mrb[0].mxu0
        %2025 = vmatprep.mubr.f32.mxu0 0.0
        %2026 = vmatmul.mubr.f32.gmra.mrb[0].mxu0 %v1944
        %v2027 = vpop.f32.mrb[0].mxu0
        %v2028 = vadd.f32 0.0, %v2027
        %v2029 = vpop.f32.mrb[0].mxu0
        %2030 = vdwg.mxu0
        %v2032 = vlaneseq
        %v2033 = vshrl.u32 %v2032, 7
        %v2034 = vsub.s32 0, %v2033
        %v2035 = vrot.slane %v425, %v2034
        %v2037 = vadd.f32 %v2013, %v2035
        %v2038 = vadd.f32 %v2018, %v2035
        %v2039 = vadd.f32 %v2023, %v2035
        %v2040 = vadd.f32 %v2028, %v2035
        %v2041 = vadd.f32 %v2037, %v428
        %v2042 = vadd.f32 %v2038, %v429
        %v2043 = vadd.f32 %v2039, %v430
        %v2044 = vadd.f32 %v2040, %v431
        %v2045 = vsel %vm436, %v2041, 0.0
        %v2046 = vrot.slane %v2045, 4
        %v2047 = vadd.f32 %v2045, %v2046
        %v2048 = vrot.slane %v2047, 2
        %v2049 = vadd.f32 %v2047, %v2048
        %v2050 = vrot.slane %v2049, 1
        %v2051 = vadd.f32 %v2049, %v2050
        %v2052 = vsel %vm436, %v2042, 0.0
        %v2053 = vrot.slane %v2052, 4
        %v2054 = vadd.f32 %v2052, %v2053
        %v2055 = vrot.slane %v2054, 2
        %v2056 = vadd.f32 %v2054, %v2055
        %v2057 = vrot.slane %v2056, 1
        %v2058 = vadd.f32 %v2056, %v2057
        %v2059 = vsel %vm436, %v2043, 0.0
        %v2060 = vrot.slane %v2059, 4
        %v2061 = vadd.f32 %v2059, %v2060
        %v2062 = vrot.slane %v2061, 2
        %v2063 = vadd.f32 %v2061, %v2062
        %v2064 = vrot.slane %v2063, 1
        %v2065 = vadd.f32 %v2063, %v2064
        %v2066 = vsel %vm436, %v2044, 0.0
        %v2067 = vrot.slane %v2066, 4
        %v2068 = vadd.f32 %v2066, %v2067
        %v2069 = vrot.slane %v2068, 2
        %v2070 = vadd.f32 %v2068, %v2069
        %v2071 = vrot.slane %v2070, 1
        %v2072 = vadd.f32 %v2070, %v2071
        %v2073 = vmul.f32 %v2041, %v2041
        %v2074 = vmul.f32 %v2042, %v2042
        %v2075 = vmul.f32 %v2043, %v2043
        %v2076 = vmul.f32 %v2044, %v2044
        %v2077 = vsel %vm436, %v2073, 0.0
        %v2078 = vrot.slane %v2077, 4
        %v2079 = vadd.f32 %v2077, %v2078
        %v2080 = vrot.slane %v2079, 2
        %v2081 = vadd.f32 %v2079, %v2080
        %v2082 = vrot.slane %v2081, 1
        %v2083 = vadd.f32 %v2081, %v2082
        %v2084 = vsel %vm436, %v2074, 0.0
        %v2085 = vrot.slane %v2084, 4
        %v2086 = vadd.f32 %v2084, %v2085
        %v2087 = vrot.slane %v2086, 2
        %v2088 = vadd.f32 %v2086, %v2087
        %v2089 = vrot.slane %v2088, 1
        %v2090 = vadd.f32 %v2088, %v2089
        %v2091 = vsel %vm436, %v2075, 0.0
        %v2092 = vrot.slane %v2091, 4
        %v2093 = vadd.f32 %v2091, %v2092
        %v2094 = vrot.slane %v2093, 2
        %v2095 = vadd.f32 %v2093, %v2094
        %v2096 = vrot.slane %v2095, 1
        %v2097 = vadd.f32 %v2095, %v2096
        %v2098 = vsel %vm436, %v2076, 0.0
        %v2099 = vrot.slane %v2098, 4
        %v2100 = vadd.f32 %v2098, %v2099
        %v2101 = vrot.slane %v2100, 2
        %v2102 = vadd.f32 %v2100, %v2101
        %v2103 = vrot.slane %v2102, 1
        %v2104 = vadd.f32 %v2102, %v2103
        %v2105 = vmul.f32 %v2051, 0.125
        %v2106 = vmul.f32 %v2058, 0.125
        %v2107 = vmul.f32 %v2065, 0.125
        %v2108 = vmul.f32 %v2072, 0.125
        %v2109 = vmul.f32 %v2083, 0.125
        %v2110 = vmul.f32 %v2090, 0.125
        %v2111 = vmul.f32 %v2097, 0.125
        %v2112 = vmul.f32 %v2104, 0.125
        %v2113 = vmul.f32 %v2105, %v2105
        %v2114 = vmul.f32 %v2106, %v2106
        %v2115 = vmul.f32 %v2107, %v2107
        %v2116 = vmul.f32 %v2108, %v2108
        %v2117 = vsub.f32 %v2109, %v2113
        %v2118 = vsub.f32 %v2110, %v2114
        %v2119 = vsub.f32 %v2111, %v2115
        %v2120 = vsub.f32 %v2112, %v2116
        %v2121 = vsub.f32 %v2041, %v2105
        %v2122 = vsub.f32 %v2042, %v2106
        %v2123 = vsub.f32 %v2043, %v2107
        %v2124 = vsub.f32 %v2044, %v2108
        %v2125 = vadd.f32 %v2117, 1e-05
        %v2126 = vadd.f32 %v2118, 1e-05
        %v2127 = vadd.f32 %v2119, 1e-05
        %v2128 = vadd.f32 %v2120, 1e-05
        %v2129 = vrsqrt.pop %v2125
        %v2130 = vrsqrt.pop %v2126
        %v2131 = vrsqrt.pop %v2127
        %v2132 = vrsqrt.pop %v2128
        %v2133 = vmul.f32 %v2121, %v2129
        %v2134 = vmul.f32 %v2122, %v2130
        %v2135 = vmul.f32 %v2123, %v2131
        %v2136 = vmul.f32 %v2124, %v2132
        %2138 = vset.pattern.permute.xlu0 0
        %2139 = vperm.xlu0 %2138, %v426
        %v2140 = vpop.permute.xlu0 %2139
        %v2142 = vmul.f32 %v2133, %v2140
        %v2143 = vmul.f32 %v2134, %v2140
        %v2144 = vmul.f32 %v2135, %v2140
        %v2145 = vmul.f32 %v2136, %v2140
        %2146 = vset.pattern.permute.xlu0 1
        %2147 = vperm.xlu0 %2146, %v426
        %v2148 = vpop.permute.xlu0 %2147
        %v2150 = vadd.f32 %v2142, %v2148
        %v2151 = vadd.f32 %v2143, %v2148
        %v2152 = vadd.f32 %v2144, %v2148
        %v2153 = vadd.f32 %v2145, %v2148
        %2154 = vst.msk [vmem:[%s397] sm:$0xff] %vm436, %v2150
        %2155 = vst.msk [vmem:[%s397 + $0x8] sm:$0xff] %vm436, %v2151
        %2156 = vst.msk [vmem:[%s397 + $0x10] sm:$0xff] %vm436, %v2152
        %2157 = vst.msk [vmem:[%s397 + $0x18] sm:$0xff] %vm436, %v2153
        %s2158 = sand.u32 %s235, 1
        %s2159 = scalar_lea.sflag [#allocation5], %s2158
        %s2160 = sand.u32 %s235, 1
        %s2161 = smul.addr %s2160, 32
        %s2162 = scalar_lea.vmem [#allocation8], %s2161
        %s2163 = sand.u32 %s261, 1
        %s2164 = scalar_lea.sflag [#allocation10], %s2163
        %s2165 = sand.u32 %s261, 1
        %s2166 = smul.addr %s2165, 4
        %s2167 = scalar_lea.vmem [#allocation9], %s2166
        // Predicated region
        $region65: #{tpu_custom_call.1} parent=55 // pred_check
          %p2168 = pneg %p245
        $region66: #{tpu_custom_call.1} parent=55 // pred_check_branch
          %2170 = sbr.rel (%p2168) target = $region68
        $region67: #{tpu_custom_call.1} parent=55 // pred_region
          %s2171 = smul.u32 4, %s33
          %s2173 = ssub.s32 512, 512
          %2174 = vsyncadd %s2159, %s2173
          %s2175 = smul.addr %s2171, 128
          %s2176 = scalar_lea.hbm %s9, %s2175
          %s2177 = sshll.u32 %s2162, 4
          %s2178 = int_to_ptr.vmem [resolvable:$true] %s2177
          %2183 = dma.vmem_to_hbm [thread:$0]  %s2178, 512, %s2176, %s2159, 128, 128, 8
        $region68: #{tpu_custom_call.1} parent=55 // pred_fallthru
          _
        // Predicated region
        $region69: #{tpu_custom_call.1} parent=55 // pred_check
          %p2184 = pneg %p271
        $region70: #{tpu_custom_call.1} parent=55 // pred_check_branch
          %2186 = sbr.rel (%p2184) target = $region72
        $region71: #{tpu_custom_call.1} parent=55 // pred_region
          %s2187 = smul.u32 4, %s33
          %s2189 = ssub.s32 64, 64
          %2190 = vsyncadd %s2164, %s2189
          %s2191 = smul.addr %s2187, 16
          %s2192 = scalar_lea.hbm %s10, %s2191
          %s2193 = sshll.u32 %s2167, 4
          %s2194 = int_to_ptr.vmem [resolvable:$true] %s2193
          %2199 = dma.vmem_to_hbm [thread:$0]  %s2194, 64, %s2192, %s2164, 16, 16, 1
        $region72: #{tpu_custom_call.1} parent=55 // pred_fallthru
          _
      $region56: #{tpu_custom_call.1} parent=5 // pred_fallthru
        _
      %p2200 = scmp.le.s32.totalorder 2, %s28
      // Predicated region
      $region73: #{tpu_custom_call.1} parent=5 // pred_check
        %p2201 = pneg %p2200
      $region74: #{tpu_custom_call.1} parent=5 // pred_check_branch
        %2203 = sbr.rel (%p2201) target = $region76
      $region75: #{tpu_custom_call.1} parent=5 // pred_region
        %s2204 = ssub.s32 %s28, 2
        // Predicated region
        $region77: #{tpu_custom_call.1} parent=75 // pred_check
          %p2205 = pneg %p251
        $region78: #{tpu_custom_call.1} parent=75 // pred_check_branch
          %2207 = sbr.rel (%p2205) target = $region80
        $region79: #{tpu_custom_call.1} parent=75 // pred_region
          %s2208 = sand.u32 %s236, 1
          %s2209 = scalar_lea.sflag [#allocation5], %s2208
          %s2210 = sand.u32 %s236, 1
          %s2211 = smul.addr %s2210, 32
          %s2212 = scalar_lea.vmem [#allocation8], %s2211
          %2213 = dma.done %s2209, 512
        $region80: #{tpu_custom_call.1} parent=75 // pred_fallthru
          _
        // Predicated region
        $region81: #{tpu_custom_call.1} parent=75 // pred_check
          %p2214 = pneg %p277
        $region82: #{tpu_custom_call.1} parent=75 // pred_check_branch
          %2216 = sbr.rel (%p2214) target = $region84
        $region83: #{tpu_custom_call.1} parent=75 // pred_region
          %s2217 = sand.u32 %s262, 1
          %s2218 = scalar_lea.sflag [#allocation10], %s2217
          %s2219 = sand.u32 %s262, 1
          %s2220 = smul.addr %s2219, 4
          %s2221 = scalar_lea.vmem [#allocation9], %s2220
          %2222 = dma.done %s2218, 64
        $region84: #{tpu_custom_call.1} parent=75 // pred_fallthru
          _
      $region76: #{tpu_custom_call.1} parent=5 // pred_fallthru
        _
    $region6: #{tpu_custom_call.1} parent=1 // loop_footer
      %s32 = sadd.s32 1, %s28
    $region7: #{tpu_custom_call.1} parent=1 // loop_footer_branch
      %27 = sbr.rel target = $region3
    $region8: #{tpu_custom_call.1} parent=1 // loop_exit
      _
    %2223 = vsyncpa [#allocation4], 1
    %s2224 = scalar_lea.sflag [#allocation4], 1
    %2225 = vsyncpa %s2224, 1
    %2226 = vsyncpa [#allocation7], 1
    %2227 = vsyncpa [#allocation5], 1
    %s2228 = scalar_lea.sflag [#allocation5], 1
    %2229 = vsyncpa %s2228, 1
    %2230 = vsyncpa [#allocation10], 1
    %s2231 = scalar_lea.sflag [#allocation10], 1
    %2232 = vsyncpa %s2231, 1

</llo_original>
